<compile_context>
chip_gen: v6e
topology: v6e:2x2x1
jax: 0.10.0
libtpu: 0.0.40
codegen_flags: <defaults>
</compile_context>

<pallas_src>
import functools

import jax
import jax.numpy as jnp
from jax import lax
from jax.experimental import pallas as pl
from jax.experimental.pallas import tpu as pltpu


# ----------------------------- Pallas kernel -------------------------------

def make_irpnet_kernel(seq_len, batch, hidden, rnn_layers):
    H = hidden

    def kernel(*args):
        # args layout:
        #   x_ref                                   (seq*batch, emb)   time-major
        #   [w_ih_l (in,4H), w_hh_l (H,4H), b_l (1,4H)] * rnn_layers
        #   w1 (H, fc_hidden), b1 (1, fc_hidden), w2 (fc_hidden, out), b2 (1, out)
        #   out_ref (batch, out)
        #   hseq scratch (seq*batch, H)   -- inter-layer activations
        #   gbuf scratch (seq*batch, 4H)  -- hoisted input-projection gates
        idx = 0
        x_ref = args[idx]; idx += 1
        layer_refs = []
        for _ in range(rnn_layers):
            layer_refs.append((args[idx], args[idx + 1], args[idx + 2]))
            idx += 3
        w1_ref, b1_ref, w2_ref, b2_ref = args[idx:idx + 4]; idx += 4
        out_ref = args[idx]; idx += 1
        hseq = args[idx]; idx += 1
        gbuf = args[idx]

        h_final = None
        for l in range(rnn_layers):
            w_ih_ref, w_hh_ref, b_ref = layer_refs[l]

            # ---- hoisted input projection: one big matmul, bias folded in ----
            layer_in = x_ref[...] if l == 0 else hseq[...]     # (S*B, in)
            gbuf[...] = (jnp.dot(layer_in, w_ih_ref[...],
                                 preferred_element_type=jnp.float32)
                         + b_ref[...])                          # (S*B, 4H)

            w_hh = w_hh_ref[...]                                # (H, 4H), resident
            last_layer = (l == rnn_layers - 1)

            def step(t, carry, w_hh=w_hh, last_layer=last_layer):
                h_prev, c_prev = carry
                row = pl.multiple_of(t * batch, batch)
                # Only the hidden projection sits on the serial chain.
                gates = (gbuf[pl.ds(row, batch), :]
                         + jnp.dot(h_prev, w_hh,
                                   preferred_element_type=jnp.float32))  # (B,4H)
                # Full-vreg activations (gates is exactly one (8,128) f32 vreg),
                # then static lane slices. PyTorch gate order: i, f, g, o.
                sig = jax.nn.sigmoid(gates)
                th = jnp.tanh(gates)
                i_g = sig[:, 0:H]
                f_g = sig[:, H:2 * H]
                g_g = th[:, 2 * H:3 * H]
                o_g = sig[:, 3 * H:4 * H]
                c = f_g * c_prev + i_g * g_g
                h = o_g * jnp.tanh(c)
                if not last_layer:                     # last layer's hseq never read
                    hseq[pl.ds(row, batch), :] = h
                return (h, c)

            h0 = jnp.zeros((batch, H), jnp.float32)    # init_hidden() -> zeros
            c0 = jnp.zeros((batch, H), jnp.float32)
            h_final, _ = lax.fori_loop(0, seq_len, step, (h0, c0), unroll=True)

        # ---- FC head on h[-1] (final hidden state of the last layer) ----
        x = jnp.dot(h_final, w1_ref[...], preferred_element_type=jnp.float32) + b1_ref[...]
        x = jax.nn.sigmoid(x)
        # Dropout(p=0.4): identity in eval/inference mode (deterministic kernel).
        logits = jnp.dot(x, w2_ref[...], preferred_element_type=jnp.float32) + b2_ref[...]
        m = jnp.max(logits, axis=1, keepdims=True)
        e = jnp.exp(logits - m)
        out_ref[...] = e / jnp.sum(e, axis=1, keepdims=True)   # exact softmax

    return kernel


# ------------------------------ Wrapper ------------------------------------

def irpnet_forward(input_batch, params, *, hidden, rnn_layers):
    """input_batch: int32 (batch, seq) token ids."""
    batch, seq_len = input_batch.shape
    # Embedding lookup (gather) is glue in plain JAX; gather directly in
    # time-major (seq, batch, emb) order, then flatten for the kernel.
    x = params["embedding"][input_batch.T].astype(jnp.float32)  # (seq, batch, emb)
    emb = x.shape[-1]
    x2d = x.reshape(seq_len * batch, emb)

    operands = [x2d]
    for l in range(rnn_layers):
        w_ih = params[f"w_ih_{l}"]          # (4H, in)
        w_hh = params[f"w_hh_{l}"]          # (4H, H)
        b = params[f"b_ih_{l}"] + params[f"b_hh_{l}"]
        operands += [w_ih.T, w_hh.T, b[None, :]]
    operands += [params["fc1_w"].T, params["fc1_b"][None, :],
                 params["fc2_w"].T, params["fc2_b"][None, :]]

    out_size = params["fc2_w"].shape[0]
    kernel = make_irpnet_kernel(seq_len, batch, hidden, rnn_layers)

    # Whole-array VMEM residency: everything here is tiny (< a few hundred KiB).
    # TODO(synk): for scaled configs (long seq / large hidden) chunk x/hseq over
    # a sequence grid and re-derive the VMEM budget (64 MiB on v7x).
    return pl.pallas_call(
        kernel,
        out_shape=jax.ShapeDtypeStruct((batch, out_size), jnp.float32),
        in_specs=[pl.BlockSpec(memory_space=pltpu.MemorySpace.VMEM)] * len(operands),
        out_specs=pl.BlockSpec(memory_space=pltpu.MemorySpace.VMEM),
        scratch_shapes=[pltpu.VMEM((seq_len * batch, hidden), jnp.float32),
                        pltpu.VMEM((seq_len * batch, 4 * hidden), jnp.float32)],
    )(*operands)


# --------------------------- Pure-JAX reference -----------------------------

def irpnet_reference(input_batch, params, *, hidden, rnn_layers):
    H = hidden
    x = params["embedding"][input_batch].astype(jnp.float32)   # (batch, seq, emb)
    batch, seq_len, _ = x.shape
    layer_in = x
    h = None
    for l in range(rnn_layers):
        w_ih, w_hh = params[f"w_ih_{l}"], params[f"w_hh_{l}"]
        b = params[f"b_ih_{l}"] + params[f"b_hh_{l}"]
        hs = []
        h = jnp.zeros((batch, H), jnp.float32)
        c = jnp.zeros((batch, H), jnp.float32)
        for t in range(seq_len):
            g = layer_in[:, t, :] @ w_ih.T + h @ w_hh.T + b
            i = jax.nn.sigmoid(g[:, 0:H]); f = jax.nn.sigmoid(g[:, H:2 * H])
            gg = jnp.tanh(g[:, 2 * H:3 * H]); o = jax.nn.sigmoid(g[:, 3 * H:4 * H])
            c = f * c + i * gg
            h = o * jnp.tanh(c)
            hs.append(h)
        layer_in = jnp.stack(hs, axis=1)
    y = jax.nn.sigmoid(h @ params["fc1_w"].T + params["fc1_b"])
    logits = y @ params["fc2_w"].T + params["fc2_b"]
    return jax.nn.softmax(logits, axis=1)


# ------------------------------- Main ---------------------------------------

if __name__ == "__main__":
    # Small, deterministic configuration.
    vocab_size = 50
    embedding_size = 32
    hidden_size = 32
    fc_hidden_size = 64
    output_size = 8
    rnn_layers = 2
    batch = 8
    seq = 8

    key = jax.random.PRNGKey(0)
    keys = jax.random.split(key, 16)

    params = {"embedding": jax.random.normal(keys[0], (vocab_size, embedding_size),
                                             jnp.float32) * 0.5}
    k = 1
    for l in range(rnn_layers):
        in_size = embedding_size if l == 0 else hidden_size
        params[f"w_ih_{l}"] = jax.random.normal(keys[k], (4 * hidden_size, in_size),
                                                jnp.float32) * 0.1; k += 1
        params[f"w_hh_{l}"] = jax.random.normal(keys[k], (4 * hidden_size, hidden_size),
                                                jnp.float32) * 0.1; k += 1
        params[f"b_ih_{l}"] = jax.random.normal(keys[k], (4 * hidden_size,),
                                                jnp.float32) * 0.1; k += 1
        params[f"b_hh_{l}"] = jax.random.normal(keys[k], (4 * hidden_size,),
                                                jnp.float32) * 0.1; k += 1
    params["fc1_w"] = jax.random.normal(keys[k], (fc_hidden_size, hidden_size),
                                        jnp.float32) * 0.1; k += 1
    params["fc1_b"] = jax.random.normal(keys[k], (fc_hidden_size,), jnp.float32) * 0.1; k += 1
    params["fc2_w"] = jax.random.normal(keys[k], (output_size, fc_hidden_size),
                                        jnp.float32) * 0.1; k += 1
    params["fc2_b"] = jax.random.normal(keys[k], (output_size,), jnp.float32) * 0.1; k += 1

    input_batch = jax.random.randint(keys[15], (batch, seq), 0, vocab_size, jnp.int32)

    fwd = jax.jit(functools.partial(irpnet_forward, hidden=hidden_size,
                                    rnn_layers=rnn_layers))
    out = fwd(input_batch, params)
    out = jax.block_until_ready(out)

    ref = irpnet_reference(input_batch, params, hidden=hidden_size,
                           rnn_layers=rnn_layers)

    assert out.shape == (batch, output_size)
    assert jnp.allclose(jnp.sum(out, axis=1), 1.0, atol=1e-5)
    assert jnp.allclose(out, ref, atol=1e-5, rtol=1e-5), (out, ref)
    print("KERNEL_OK")
</pallas_src>

<mosaic_0001>
module attributes {stable_mosaic.version = 11 : i64} {
  func.func @kernel(%arg0: memref<64x32xf32, #tpu.memory_space<vmem>>, %arg1: memref<32x128xf32, #tpu.memory_space<vmem>>, %arg2: memref<32x128xf32, #tpu.memory_space<vmem>>, %arg3: memref<1x128xf32, #tpu.memory_space<vmem>>, %arg4: memref<32x128xf32, #tpu.memory_space<vmem>>, %arg5: memref<32x128xf32, #tpu.memory_space<vmem>>, %arg6: memref<1x128xf32, #tpu.memory_space<vmem>>, %arg7: memref<32x64xf32, #tpu.memory_space<vmem>>, %arg8: memref<1x64xf32, #tpu.memory_space<vmem>>, %arg9: memref<64x8xf32, #tpu.memory_space<vmem>>, %arg10: memref<1x8xf32, #tpu.memory_space<vmem>>, %arg11: memref<8x8xf32, #tpu.memory_space<vmem>>, %arg12: memref<64x32xf32, #tpu.memory_space<vmem>>, %arg13: memref<64x128xf32, #tpu.memory_space<vmem>>) attributes {dimension_semantics = [], scalar_prefetch = 0 : i64, scratch_operands = 2 : i64, tpu.core_type = #tpu.core_type<tc>} {
    %c0 = arith.constant 0 : index
    %c0_0 = arith.constant 0 : index
    %0 = vector.load %arg0[%c0, %c0_0] : memref<64x32xf32, #tpu.memory_space<vmem>>, vector<64x32xf32>
    %c0_1 = arith.constant 0 : index
    %c0_2 = arith.constant 0 : index
    %1 = vector.load %arg1[%c0_1, %c0_2] : memref<32x128xf32, #tpu.memory_space<vmem>>, vector<32x128xf32>
    %cst = arith.constant dense<0.000000e+00> : vector<64x128xf32>
    %2 = tpu.matmul %0, %1, %cst {dimension_numbers = #tpu.dot_dimension_numbers<[1], [0], [0], [1], [0, 0, 1, 1], [], []>} : vector<64x32xf32>, vector<32x128xf32>, vector<64x128xf32> -> vector<64x128xf32>
    %c0_3 = arith.constant 0 : index
    %c0_4 = arith.constant 0 : index
    %3 = vector.load %arg3[%c0_3, %c0_4] : memref<1x128xf32, #tpu.memory_space<vmem>>, vector<1x128xf32>
    %4 = vector.broadcast %3 : vector<1x128xf32> to vector<64x128xf32>
    %5 = arith.addf %2, %4 : vector<64x128xf32>
    %c0_5 = arith.constant 0 : index
    %c0_6 = arith.constant 0 : index
    %6 = vector.load %arg13[%c0_5, %c0_6] : memref<64x128xf32, #tpu.memory_space<vmem>>, vector<64x128xf32>
    tpu.vector_store %arg13[%c0_5, %c0_6], %5 {strides = array<i32>} : memref<64x128xf32, #tpu.memory_space<vmem>>, vector<64x128xf32>,
    %c0_7 = arith.constant 0 : index
    %c0_8 = arith.constant 0 : index
    %7 = vector.load %arg2[%c0_7, %c0_8] : memref<32x128xf32, #tpu.memory_space<vmem>>, vector<32x128xf32>
    %cst_9 = arith.constant 0.000000e+00 : f32
    %8 = vector.broadcast %cst_9 : f32 to vector<8x32xf32>
    %cst_10 = arith.constant 0.000000e+00 : f32
    %9 = vector.broadcast %cst_10 : f32 to vector<8x32xf32>
    %c0_i32 = arith.constant 0 : i32
    %c8_i32 = arith.constant 8 : i32
    %10 = arith.muli %c0_i32, %c8_i32 : i32
    %11 = tpu.assume_multiple %10, 8 : i32
    %12 = arith.index_cast %11 : i32 to index
    %c0_11 = arith.constant 0 : index
    %13 = vector.load %arg13[%12, %c0_11] : memref<64x128xf32, #tpu.memory_space<vmem>>, vector<8x128xf32>
    %cst_12 = arith.constant dense<0.000000e+00> : vector<8x128xf32>
    %14 = tpu.matmul %8, %7, %cst_12 {dimension_numbers = #tpu.dot_dimension_numbers<[1], [0], [0], [1], [0, 0, 1, 1], [], []>} : vector<8x32xf32>, vector<32x128xf32>, vector<8x128xf32> -> vector<8x128xf32>
    %15 = arith.addf %13, %14 : vector<8x128xf32>
    %16 = arith.negf %15 : vector<8x128xf32>
    %17 = math.exp %16 : vector<8x128xf32>
    %cst_13 = arith.constant 1.000000e+00 : f32
    %18 = vector.broadcast %cst_13 : f32 to vector<8x128xf32>
    %19 = arith.addf %18, %17 : vector<8x128xf32>
    %20 = arith.divf %18, %19 : vector<8x128xf32>
    %21 = math.tanh %15 : vector<8x128xf32>
    %22 = vector.extract_strided_slice %20 {offsets = [0, 0], sizes = [8, 32], strides = [1, 1]} : vector<8x128xf32> to vector<8x32xf32>
    %23 = vector.extract_strided_slice %20 {offsets = [0, 32], sizes = [8, 32], strides = [1, 1]} : vector<8x128xf32> to vector<8x32xf32>
    %24 = vector.extract_strided_slice %21 {offsets = [0, 64], sizes = [8, 32], strides = [1, 1]} : vector<8x128xf32> to vector<8x32xf32>
    %25 = vector.extract_strided_slice %20 {offsets = [0, 96], sizes = [8, 32], strides = [1, 1]} : vector<8x128xf32> to vector<8x32xf32>
    %26 = arith.mulf %23, %9 : vector<8x32xf32>
    %27 = arith.mulf %22, %24 : vector<8x32xf32>
    %28 = arith.addf %26, %27 : vector<8x32xf32>
    %29 = math.tanh %28 : vector<8x32xf32>
    %30 = arith.mulf %25, %29 : vector<8x32xf32>
    %31 = arith.index_cast %11 : i32 to index
    %c0_14 = arith.constant 0 : index
    %32 = vector.load %arg12[%31, %c0_14] : memref<64x32xf32, #tpu.memory_space<vmem>>, vector<8x32xf32>
    tpu.vector_store %arg12[%31, %c0_14], %30 {strides = array<i32>} : memref<64x32xf32, #tpu.memory_space<vmem>>, vector<8x32xf32>,
    %c1_i32 = arith.constant 1 : i32
    %c8_i32_15 = arith.constant 8 : i32
    %33 = arith.muli %c1_i32, %c8_i32_15 : i32
    %34 = tpu.assume_multiple %33, 8 : i32
    %35 = arith.index_cast %34 : i32 to index
    %c0_16 = arith.constant 0 : index
    %36 = vector.load %arg13[%35, %c0_16] : memref<64x128xf32, #tpu.memory_space<vmem>>, vector<8x128xf32>
    %cst_17 = arith.constant dense<0.000000e+00> : vector<8x128xf32>
    %37 = tpu.matmul %30, %7, %cst_17 {dimension_numbers = #tpu.dot_dimension_numbers<[1], [0], [0], [1], [0, 0, 1, 1], [], []>} : vector<8x32xf32>, vector<32x128xf32>, vector<8x128xf32> -> vector<8x128xf32>
    %38 = arith.addf %36, %37 : vector<8x128xf32>
    %39 = arith.negf %38 : vector<8x128xf32>
    %40 = math.exp %39 : vector<8x128xf32>
    %cst_18 = arith.constant 1.000000e+00 : f32
    %41 = vector.broadcast %cst_18 : f32 to vector<8x128xf32>
    %42 = arith.addf %41, %40 : vector<8x128xf32>
    %43 = arith.divf %41, %42 : vector<8x128xf32>
    %44 = math.tanh %38 : vector<8x128xf32>
    %45 = vector.extract_strided_slice %43 {offsets = [0, 0], sizes = [8, 32], strides = [1, 1]} : vector<8x128xf32> to vector<8x32xf32>
    %46 = vector.extract_strided_slice %43 {offsets = [0, 32], sizes = [8, 32], strides = [1, 1]} : vector<8x128xf32> to vector<8x32xf32>
    %47 = vector.extract_strided_slice %44 {offsets = [0, 64], sizes = [8, 32], strides = [1, 1]} : vector<8x128xf32> to vector<8x32xf32>
    %48 = vector.extract_strided_slice %43 {offsets = [0, 96], sizes = [8, 32], strides = [1, 1]} : vector<8x128xf32> to vector<8x32xf32>
    %49 = arith.mulf %46, %28 : vector<8x32xf32>
    %50 = arith.mulf %45, %47 : vector<8x32xf32>
    %51 = arith.addf %49, %50 : vector<8x32xf32>
    %52 = math.tanh %51 : vector<8x32xf32>
    %53 = arith.mulf %48, %52 : vector<8x32xf32>
    %54 = arith.index_cast %34 : i32 to index
    %c0_19 = arith.constant 0 : index
    %55 = vector.load %arg12[%54, %c0_19] : memref<64x32xf32, #tpu.memory_space<vmem>>, vector<8x32xf32>
    tpu.vector_store %arg12[%54, %c0_19], %53 {strides = array<i32>} : memref<64x32xf32, #tpu.memory_space<vmem>>, vector<8x32xf32>,
    %c2_i32 = arith.constant 2 : i32
    %c8_i32_20 = arith.constant 8 : i32
    %56 = arith.muli %c2_i32, %c8_i32_20 : i32
    %57 = tpu.assume_multiple %56, 8 : i32
    %58 = arith.index_cast %57 : i32 to index
    %c0_21 = arith.constant 0 : index
    %59 = vector.load %arg13[%58, %c0_21] : memref<64x128xf32, #tpu.memory_space<vmem>>, vector<8x128xf32>
    %cst_22 = arith.constant dense<0.000000e+00> : vector<8x128xf32>
    %60 = tpu.matmul %53, %7, %cst_22 {dimension_numbers = #tpu.dot_dimension_numbers<[1], [0], [0], [1], [0, 0, 1, 1], [], []>} : vector<8x32xf32>, vector<32x128xf32>, vector<8x128xf32> -> vector<8x128xf32>
    %61 = arith.addf %59, %60 : vector<8x128xf32>
    %62 = arith.negf %61 : vector<8x128xf32>
    %63 = math.exp %62 : vector<8x128xf32>
    %cst_23 = arith.constant 1.000000e+00 : f32
    %64 = vector.broadcast %cst_23 : f32 to vector<8x128xf32>
    %65 = arith.addf %64, %63 : vector<8x128xf32>
    %66 = arith.divf %64, %65 : vector<8x128xf32>
    %67 = math.tanh %61 : vector<8x128xf32>
    %68 = vector.extract_strided_slice %66 {offsets = [0, 0], sizes = [8, 32], strides = [1, 1]} : vector<8x128xf32> to vector<8x32xf32>
    %69 = vector.extract_strided_slice %66 {offsets = [0, 32], sizes = [8, 32], strides = [1, 1]} : vector<8x128xf32> to vector<8x32xf32>
    %70 = vector.extract_strided_slice %67 {offsets = [0, 64], sizes = [8, 32], strides = [1, 1]} : vector<8x128xf32> to vector<8x32xf32>
    %71 = vector.extract_strided_slice %66 {offsets = [0, 96], sizes = [8, 32], strides = [1, 1]} : vector<8x128xf32> to vector<8x32xf32>
    %72 = arith.mulf %69, %51 : vector<8x32xf32>
    %73 = arith.mulf %68, %70 : vector<8x32xf32>
    %74 = arith.addf %72, %73 : vector<8x32xf32>
    %75 = math.tanh %74 : vector<8x32xf32>
    %76 = arith.mulf %71, %75 : vector<8x32xf32>
    %77 = arith.index_cast %57 : i32 to index
    %c0_24 = arith.constant 0 : index
    %78 = vector.load %arg12[%77, %c0_24] : memref<64x32xf32, #tpu.memory_space<vmem>>, vector<8x32xf32>
    tpu.vector_store %arg12[%77, %c0_24], %76 {strides = array<i32>} : memref<64x32xf32, #tpu.memory_space<vmem>>, vector<8x32xf32>,
    %c3_i32 = arith.constant 3 : i32
    %c8_i32_25 = arith.constant 8 : i32
    %79 = arith.muli %c3_i32, %c8_i32_25 : i32
    %80 = tpu.assume_multiple %79, 8 : i32
    %81 = arith.index_cast %80 : i32 to index
    %c0_26 = arith.constant 0 : index
    %82 = vector.load %arg13[%81, %c0_26] : memref<64x128xf32, #tpu.memory_space<vmem>>, vector<8x128xf32>
    %cst_27 = arith.constant dense<0.000000e+00> : vector<8x128xf32>
    %83 = tpu.matmul %76, %7, %cst_27 {dimension_numbers = #tpu.dot_dimension_numbers<[1], [0], [0], [1], [0, 0, 1, 1], [], []>} : vector<8x32xf32>, vector<32x128xf32>, vector<8x128xf32> -> vector<8x128xf32>
    %84 = arith.addf %82, %83 : vector<8x128xf32>
    %85 = arith.negf %84 : vector<8x128xf32>
    %86 = math.exp %85 : vector<8x128xf32>
    %cst_28 = arith.constant 1.000000e+00 : f32
    %87 = vector.broadcast %cst_28 : f32 to vector<8x128xf32>
    %88 = arith.addf %87, %86 : vector<8x128xf32>
    %89 = arith.divf %87, %88 : vector<8x128xf32>
    %90 = math.tanh %84 : vector<8x128xf32>
    %91 = vector.extract_strided_slice %89 {offsets = [0, 0], sizes = [8, 32], strides = [1, 1]} : vector<8x128xf32> to vector<8x32xf32>
    %92 = vector.extract_strided_slice %89 {offsets = [0, 32], sizes = [8, 32], strides = [1, 1]} : vector<8x128xf32> to vector<8x32xf32>
    %93 = vector.extract_strided_slice %90 {offsets = [0, 64], sizes = [8, 32], strides = [1, 1]} : vector<8x128xf32> to vector<8x32xf32>
    %94 = vector.extract_strided_slice %89 {offsets = [0, 96], sizes = [8, 32], strides = [1, 1]} : vector<8x128xf32> to vector<8x32xf32>
    %95 = arith.mulf %92, %74 : vector<8x32xf32>
    %96 = arith.mulf %91, %93 : vector<8x32xf32>
    %97 = arith.addf %95, %96 : vector<8x32xf32>
    %98 = math.tanh %97 : vector<8x32xf32>
    %99 = arith.mulf %94, %98 : vector<8x32xf32>
    %100 = arith.index_cast %80 : i32 to index
    %c0_29 = arith.constant 0 : index
    %101 = vector.load %arg12[%100, %c0_29] : memref<64x32xf32, #tpu.memory_space<vmem>>, vector<8x32xf32>
    tpu.vector_store %arg12[%100, %c0_29], %99 {strides = array<i32>} : memref<64x32xf32, #tpu.memory_space<vmem>>, vector<8x32xf32>,
    %c4_i32 = arith.constant 4 : i32
    %c8_i32_30 = arith.constant 8 : i32
    %102 = arith.muli %c4_i32, %c8_i32_30 : i32
    %103 = tpu.assume_multiple %102, 8 : i32
    %104 = arith.index_cast %103 : i32 to index
    %c0_31 = arith.constant 0 : index
    %105 = vector.load %arg13[%104, %c0_31] : memref<64x128xf32, #tpu.memory_space<vmem>>, vector<8x128xf32>
    %cst_32 = arith.constant dense<0.000000e+00> : vector<8x128xf32>
    %106 = tpu.matmul %99, %7, %cst_32 {dimension_numbers = #tpu.dot_dimension_numbers<[1], [0], [0], [1], [0, 0, 1, 1], [], []>} : vector<8x32xf32>, vector<32x128xf32>, vector<8x128xf32> -> vector<8x128xf32>
    %107 = arith.addf %105, %106 : vector<8x128xf32>
    %108 = arith.negf %107 : vector<8x128xf32>
    %109 = math.exp %108 : vector<8x128xf32>
    %cst_33 = arith.constant 1.000000e+00 : f32
    %110 = vector.broadcast %cst_33 : f32 to vector<8x128xf32>
    %111 = arith.addf %110, %109 : vector<8x128xf32>
    %112 = arith.divf %110, %111 : vector<8x128xf32>
    %113 = math.tanh %107 : vector<8x128xf32>
    %114 = vector.extract_strided_slice %112 {offsets = [0, 0], sizes = [8, 32], strides = [1, 1]} : vector<8x128xf32> to vector<8x32xf32>
    %115 = vector.extract_strided_slice %112 {offsets = [0, 32], sizes = [8, 32], strides = [1, 1]} : vector<8x128xf32> to vector<8x32xf32>
    %116 = vector.extract_strided_slice %113 {offsets = [0, 64], sizes = [8, 32], strides = [1, 1]} : vector<8x128xf32> to vector<8x32xf32>
    %117 = vector.extract_strided_slice %112 {offsets = [0, 96], sizes = [8, 32], strides = [1, 1]} : vector<8x128xf32> to vector<8x32xf32>
    %118 = arith.mulf %115, %97 : vector<8x32xf32>
    %119 = arith.mulf %114, %116 : vector<8x32xf32>
    %120 = arith.addf %118, %119 : vector<8x32xf32>
    %121 = math.tanh %120 : vector<8x32xf32>
    %122 = arith.mulf %117, %121 : vector<8x32xf32>
    %123 = arith.index_cast %103 : i32 to index
    %c0_34 = arith.constant 0 : index
    %124 = vector.load %arg12[%123, %c0_34] : memref<64x32xf32, #tpu.memory_space<vmem>>, vector<8x32xf32>
    tpu.vector_store %arg12[%123, %c0_34], %122 {strides = array<i32>} : memref<64x32xf32, #tpu.memory_space<vmem>>, vector<8x32xf32>,
    %c5_i32 = arith.constant 5 : i32
    %c8_i32_35 = arith.constant 8 : i32
    %125 = arith.muli %c5_i32, %c8_i32_35 : i32
    %126 = tpu.assume_multiple %125, 8 : i32
    %127 = arith.index_cast %126 : i32 to index
    %c0_36 = arith.constant 0 : index
    %128 = vector.load %arg13[%127, %c0_36] : memref<64x128xf32, #tpu.memory_space<vmem>>, vector<8x128xf32>
    %cst_37 = arith.constant dense<0.000000e+00> : vector<8x128xf32>
    %129 = tpu.matmul %122, %7, %cst_37 {dimension_numbers = #tpu.dot_dimension_numbers<[1], [0], [0], [1], [0, 0, 1, 1], [], []>} : vector<8x32xf32>, vector<32x128xf32>, vector<8x128xf32> -> vector<8x128xf32>
    %130 = arith.addf %128, %129 : vector<8x128xf32>
    %131 = arith.negf %130 : vector<8x128xf32>
    %132 = math.exp %131 : vector<8x128xf32>
    %cst_38 = arith.constant 1.000000e+00 : f32
    %133 = vector.broadcast %cst_38 : f32 to vector<8x128xf32>
    %134 = arith.addf %133, %132 : vector<8x128xf32>
    %135 = arith.divf %133, %134 : vector<8x128xf32>
    %136 = math.tanh %130 : vector<8x128xf32>
    %137 = vector.extract_strided_slice %135 {offsets = [0, 0], sizes = [8, 32], strides = [1, 1]} : vector<8x128xf32> to vector<8x32xf32>
    %138 = vector.extract_strided_slice %135 {offsets = [0, 32], sizes = [8, 32], strides = [1, 1]} : vector<8x128xf32> to vector<8x32xf32>
    %139 = vector.extract_strided_slice %136 {offsets = [0, 64], sizes = [8, 32], strides = [1, 1]} : vector<8x128xf32> to vector<8x32xf32>
    %140 = vector.extract_strided_slice %135 {offsets = [0, 96], sizes = [8, 32], strides = [1, 1]} : vector<8x128xf32> to vector<8x32xf32>
    %141 = arith.mulf %138, %120 : vector<8x32xf32>
    %142 = arith.mulf %137, %139 : vector<8x32xf32>
    %143 = arith.addf %141, %142 : vector<8x32xf32>
    %144 = math.tanh %143 : vector<8x32xf32>
    %145 = arith.mulf %140, %144 : vector<8x32xf32>
    %146 = arith.index_cast %126 : i32 to index
    %c0_39 = arith.constant 0 : index
    %147 = vector.load %arg12[%146, %c0_39] : memref<64x32xf32, #tpu.memory_space<vmem>>, vector<8x32xf32>
    tpu.vector_store %arg12[%146, %c0_39], %145 {strides = array<i32>} : memref<64x32xf32, #tpu.memory_space<vmem>>, vector<8x32xf32>,
    %c6_i32 = arith.constant 6 : i32
    %c8_i32_40 = arith.constant 8 : i32
    %148 = arith.muli %c6_i32, %c8_i32_40 : i32
    %149 = tpu.assume_multiple %148, 8 : i32
    %150 = arith.index_cast %149 : i32 to index
    %c0_41 = arith.constant 0 : index
    %151 = vector.load %arg13[%150, %c0_41] : memref<64x128xf32, #tpu.memory_space<vmem>>, vector<8x128xf32>
    %cst_42 = arith.constant dense<0.000000e+00> : vector<8x128xf32>
    %152 = tpu.matmul %145, %7, %cst_42 {dimension_numbers = #tpu.dot_dimension_numbers<[1], [0], [0], [1], [0, 0, 1, 1], [], []>} : vector<8x32xf32>, vector<32x128xf32>, vector<8x128xf32> -> vector<8x128xf32>
    %153 = arith.addf %151, %152 : vector<8x128xf32>
    %154 = arith.negf %153 : vector<8x128xf32>
    %155 = math.exp %154 : vector<8x128xf32>
    %cst_43 = arith.constant 1.000000e+00 : f32
    %156 = vector.broadcast %cst_43 : f32 to vector<8x128xf32>
    %157 = arith.addf %156, %155 : vector<8x128xf32>
    %158 = arith.divf %156, %157 : vector<8x128xf32>
    %159 = math.tanh %153 : vector<8x128xf32>
    %160 = vector.extract_strided_slice %158 {offsets = [0, 0], sizes = [8, 32], strides = [1, 1]} : vector<8x128xf32> to vector<8x32xf32>
    %161 = vector.extract_strided_slice %158 {offsets = [0, 32], sizes = [8, 32], strides = [1, 1]} : vector<8x128xf32> to vector<8x32xf32>
    %162 = vector.extract_strided_slice %159 {offsets = [0, 64], sizes = [8, 32], strides = [1, 1]} : vector<8x128xf32> to vector<8x32xf32>
    %163 = vector.extract_strided_slice %158 {offsets = [0, 96], sizes = [8, 32], strides = [1, 1]} : vector<8x128xf32> to vector<8x32xf32>
    %164 = arith.mulf %161, %143 : vector<8x32xf32>
    %165 = arith.mulf %160, %162 : vector<8x32xf32>
    %166 = arith.addf %164, %165 : vector<8x32xf32>
    %167 = math.tanh %166 : vector<8x32xf32>
    %168 = arith.mulf %163, %167 : vector<8x32xf32>
    %169 = arith.index_cast %149 : i32 to index
    %c0_44 = arith.constant 0 : index
    %170 = vector.load %arg12[%169, %c0_44] : memref<64x32xf32, #tpu.memory_space<vmem>>, vector<8x32xf32>
    tpu.vector_store %arg12[%169, %c0_44], %168 {strides = array<i32>} : memref<64x32xf32, #tpu.memory_space<vmem>>, vector<8x32xf32>,
    %c7_i32 = arith.constant 7 : i32
    %c8_i32_45 = arith.constant 8 : i32
    %171 = arith.muli %c7_i32, %c8_i32_45 : i32
    %172 = tpu.assume_multiple %171, 8 : i32
    %173 = arith.index_cast %172 : i32 to index
    %c0_46 = arith.constant 0 : index
    %174 = vector.load %arg13[%173, %c0_46] : memref<64x128xf32, #tpu.memory_space<vmem>>, vector<8x128xf32>
    %cst_47 = arith.constant dense<0.000000e+00> : vector<8x128xf32>
    %175 = tpu.matmul %168, %7, %cst_47 {dimension_numbers = #tpu.dot_dimension_numbers<[1], [0], [0], [1], [0, 0, 1, 1], [], []>} : vector<8x32xf32>, vector<32x128xf32>, vector<8x128xf32> -> vector<8x128xf32>
    %176 = arith.addf %174, %175 : vector<8x128xf32>
    %177 = arith.negf %176 : vector<8x128xf32>
    %178 = math.exp %177 : vector<8x128xf32>
    %cst_48 = arith.constant 1.000000e+00 : f32
    %179 = vector.broadcast %cst_48 : f32 to vector<8x128xf32>
    %180 = arith.addf %179, %178 : vector<8x128xf32>
    %181 = arith.divf %179, %180 : vector<8x128xf32>
    %182 = math.tanh %176 : vector<8x128xf32>
    %183 = vector.extract_strided_slice %181 {offsets = [0, 0], sizes = [8, 32], strides = [1, 1]} : vector<8x128xf32> to vector<8x32xf32>
    %184 = vector.extract_strided_slice %181 {offsets = [0, 32], sizes = [8, 32], strides = [1, 1]} : vector<8x128xf32> to vector<8x32xf32>
    %185 = vector.extract_strided_slice %182 {offsets = [0, 64], sizes = [8, 32], strides = [1, 1]} : vector<8x128xf32> to vector<8x32xf32>
    %186 = vector.extract_strided_slice %181 {offsets = [0, 96], sizes = [8, 32], strides = [1, 1]} : vector<8x128xf32> to vector<8x32xf32>
    %187 = arith.mulf %184, %166 : vector<8x32xf32>
    %188 = arith.mulf %183, %185 : vector<8x32xf32>
    %189 = arith.addf %187, %188 : vector<8x32xf32>
    %190 = math.tanh %189 : vector<8x32xf32>
    %191 = arith.mulf %186, %190 : vector<8x32xf32>
    %192 = arith.index_cast %172 : i32 to index
    %c0_49 = arith.constant 0 : index
    %193 = vector.load %arg12[%192, %c0_49] : memref<64x32xf32, #tpu.memory_space<vmem>>, vector<8x32xf32>
    tpu.vector_store %arg12[%192, %c0_49], %191 {strides = array<i32>} : memref<64x32xf32, #tpu.memory_space<vmem>>, vector<8x32xf32>,
    %c8_i32_50 = arith.constant 8 : i32
    %c0_51 = arith.constant 0 : index
    %c0_52 = arith.constant 0 : index
    %194 = vector.load %arg12[%c0_51, %c0_52] : memref<64x32xf32, #tpu.memory_space<vmem>>, vector<64x32xf32>
    %c0_53 = arith.constant 0 : index
    %c0_54 = arith.constant 0 : index
    %195 = vector.load %arg4[%c0_53, %c0_54] : memref<32x128xf32, #tpu.memory_space<vmem>>, vector<32x128xf32>
    %cst_55 = arith.constant dense<0.000000e+00> : vector<64x128xf32>
    %196 = tpu.matmul %194, %195, %cst_55 {dimension_numbers = #tpu.dot_dimension_numbers<[1], [0], [0], [1], [0, 0, 1, 1], [], []>} : vector<64x32xf32>, vector<32x128xf32>, vector<64x128xf32> -> vector<64x128xf32>
    %c0_56 = arith.constant 0 : index
    %c0_57 = arith.constant 0 : index
    %197 = vector.load %arg6[%c0_56, %c0_57] : memref<1x128xf32, #tpu.memory_space<vmem>>, vector<1x128xf32>
    %198 = vector.broadcast %197 : vector<1x128xf32> to vector<64x128xf32>
    %199 = arith.addf %196, %198 : vector<64x128xf32>
    %c0_58 = arith.constant 0 : index
    %c0_59 = arith.constant 0 : index
    %200 = vector.load %arg13[%c0_58, %c0_59] : memref<64x128xf32, #tpu.memory_space<vmem>>, vector<64x128xf32>
    tpu.vector_store %arg13[%c0_58, %c0_59], %199 {strides = array<i32>} : memref<64x128xf32, #tpu.memory_space<vmem>>, vector<64x128xf32>,
    %c0_60 = arith.constant 0 : index
    %c0_61 = arith.constant 0 : index
    %201 = vector.load %arg5[%c0_60, %c0_61] : memref<32x128xf32, #tpu.memory_space<vmem>>, vector<32x128xf32>
    %cst_62 = arith.constant 0.000000e+00 : f32
    %202 = vector.broadcast %cst_62 : f32 to vector<8x32xf32>
    %cst_63 = arith.constant 0.000000e+00 : f32
    %203 = vector.broadcast %cst_63 : f32 to vector<8x32xf32>
    %c0_i32_64 = arith.constant 0 : i32
    %c8_i32_65 = arith.constant 8 : i32
    %204 = arith.muli %c0_i32_64, %c8_i32_65 : i32
    %205 = tpu.assume_multiple %204, 8 : i32
    %206 = arith.index_cast %205 : i32 to index
    %c0_66 = arith.constant 0 : index
    %207 = vector.load %arg13[%206, %c0_66] : memref<64x128xf32, #tpu.memory_space<vmem>>, vector<8x128xf32>
    %cst_67 = arith.constant dense<0.000000e+00> : vector<8x128xf32>
    %208 = tpu.matmul %202, %201, %cst_67 {dimension_numbers = #tpu.dot_dimension_numbers<[1], [0], [0], [1], [0, 0, 1, 1], [], []>} : vector<8x32xf32>, vector<32x128xf32>, vector<8x128xf32> -> vector<8x128xf32>
    %209 = arith.addf %207, %208 : vector<8x128xf32>
    %210 = arith.negf %209 : vector<8x128xf32>
    %211 = math.exp %210 : vector<8x128xf32>
    %cst_68 = arith.constant 1.000000e+00 : f32
    %212 = vector.broadcast %cst_68 : f32 to vector<8x128xf32>
    %213 = arith.addf %212, %211 : vector<8x128xf32>
    %214 = arith.divf %212, %213 : vector<8x128xf32>
    %215 = math.tanh %209 : vector<8x128xf32>
    %216 = vector.extract_strided_slice %214 {offsets = [0, 0], sizes = [8, 32], strides = [1, 1]} : vector<8x128xf32> to vector<8x32xf32>
    %217 = vector.extract_strided_slice %214 {offsets = [0, 32], sizes = [8, 32], strides = [1, 1]} : vector<8x128xf32> to vector<8x32xf32>
    %218 = vector.extract_strided_slice %215 {offsets = [0, 64], sizes = [8, 32], strides = [1, 1]} : vector<8x128xf32> to vector<8x32xf32>
    %219 = vector.extract_strided_slice %214 {offsets = [0, 96], sizes = [8, 32], strides = [1, 1]} : vector<8x128xf32> to vector<8x32xf32>
    %220 = arith.mulf %217, %203 : vector<8x32xf32>
    %221 = arith.mulf %216, %218 : vector<8x32xf32>
    %222 = arith.addf %220, %221 : vector<8x32xf32>
    %223 = math.tanh %222 : vector<8x32xf32>
    %224 = arith.mulf %219, %223 : vector<8x32xf32>
    %c1_i32_69 = arith.constant 1 : i32
    %c8_i32_70 = arith.constant 8 : i32
    %225 = arith.muli %c1_i32_69, %c8_i32_70 : i32
    %226 = tpu.assume_multiple %225, 8 : i32
    %227 = arith.index_cast %226 : i32 to index
    %c0_71 = arith.constant 0 : index
    %228 = vector.load %arg13[%227, %c0_71] : memref<64x128xf32, #tpu.memory_space<vmem>>, vector<8x128xf32>
    %cst_72 = arith.constant dense<0.000000e+00> : vector<8x128xf32>
    %229 = tpu.matmul %224, %201, %cst_72 {dimension_numbers = #tpu.dot_dimension_numbers<[1], [0], [0], [1], [0, 0, 1, 1], [], []>} : vector<8x32xf32>, vector<32x128xf32>, vector<8x128xf32> -> vector<8x128xf32>
    %230 = arith.addf %228, %229 : vector<8x128xf32>
    %231 = arith.negf %230 : vector<8x128xf32>
    %232 = math.exp %231 : vector<8x128xf32>
    %cst_73 = arith.constant 1.000000e+00 : f32
    %233 = vector.broadcast %cst_73 : f32 to vector<8x128xf32>
    %234 = arith.addf %233, %232 : vector<8x128xf32>
    %235 = arith.divf %233, %234 : vector<8x128xf32>
    %236 = math.tanh %230 : vector<8x128xf32>
    %237 = vector.extract_strided_slice %235 {offsets = [0, 0], sizes = [8, 32], strides = [1, 1]} : vector<8x128xf32> to vector<8x32xf32>
    %238 = vector.extract_strided_slice %235 {offsets = [0, 32], sizes = [8, 32], strides = [1, 1]} : vector<8x128xf32> to vector<8x32xf32>
    %239 = vector.extract_strided_slice %236 {offsets = [0, 64], sizes = [8, 32], strides = [1, 1]} : vector<8x128xf32> to vector<8x32xf32>
    %240 = vector.extract_strided_slice %235 {offsets = [0, 96], sizes = [8, 32], strides = [1, 1]} : vector<8x128xf32> to vector<8x32xf32>
    %241 = arith.mulf %238, %222 : vector<8x32xf32>
    %242 = arith.mulf %237, %239 : vector<8x32xf32>
    %243 = arith.addf %241, %242 : vector<8x32xf32>
    %244 = math.tanh %243 : vector<8x32xf32>
    %245 = arith.mulf %240, %244 : vector<8x32xf32>
    %c2_i32_74 = arith.constant 2 : i32
    %c8_i32_75 = arith.constant 8 : i32
    %246 = arith.muli %c2_i32_74, %c8_i32_75 : i32
    %247 = tpu.assume_multiple %246, 8 : i32
    %248 = arith.index_cast %247 : i32 to index
    %c0_76 = arith.constant 0 : index
    %249 = vector.load %arg13[%248, %c0_76] : memref<64x128xf32, #tpu.memory_space<vmem>>, vector<8x128xf32>
    %cst_77 = arith.constant dense<0.000000e+00> : vector<8x128xf32>
    %250 = tpu.matmul %245, %201, %cst_77 {dimension_numbers = #tpu.dot_dimension_numbers<[1], [0], [0], [1], [0, 0, 1, 1], [], []>} : vector<8x32xf32>, vector<32x128xf32>, vector<8x128xf32> -> vector<8x128xf32>
    %251 = arith.addf %249, %250 : vector<8x128xf32>
    %252 = arith.negf %251 : vector<8x128xf32>
    %253 = math.exp %252 : vector<8x128xf32>
    %cst_78 = arith.constant 1.000000e+00 : f32
    %254 = vector.broadcast %cst_78 : f32 to vector<8x128xf32>
    %255 = arith.addf %254, %253 : vector<8x128xf32>
    %256 = arith.divf %254, %255 : vector<8x128xf32>
    %257 = math.tanh %251 : vector<8x128xf32>
    %258 = vector.extract_strided_slice %256 {offsets = [0, 0], sizes = [8, 32], strides = [1, 1]} : vector<8x128xf32> to vector<8x32xf32>
    %259 = vector.extract_strided_slice %256 {offsets = [0, 32], sizes = [8, 32], strides = [1, 1]} : vector<8x128xf32> to vector<8x32xf32>
    %260 = vector.extract_strided_slice %257 {offsets = [0, 64], sizes = [8, 32], strides = [1, 1]} : vector<8x128xf32> to vector<8x32xf32>
    %261 = vector.extract_strided_slice %256 {offsets = [0, 96], sizes = [8, 32], strides = [1, 1]} : vector<8x128xf32> to vector<8x32xf32>
    %262 = arith.mulf %259, %243 : vector<8x32xf32>
    %263 = arith.mulf %258, %260 : vector<8x32xf32>
    %264 = arith.addf %262, %263 : vector<8x32xf32>
    %265 = math.tanh %264 : vector<8x32xf32>
    %266 = arith.mulf %261, %265 : vector<8x32xf32>
    %c3_i32_79 = arith.constant 3 : i32
    %c8_i32_80 = arith.constant 8 : i32
    %267 = arith.muli %c3_i32_79, %c8_i32_80 : i32
    %268 = tpu.assume_multiple %267, 8 : i32
    %269 = arith.index_cast %268 : i32 to index
    %c0_81 = arith.constant 0 : index
    %270 = vector.load %arg13[%269, %c0_81] : memref<64x128xf32, #tpu.memory_space<vmem>>, vector<8x128xf32>
    %cst_82 = arith.constant dense<0.000000e+00> : vector<8x128xf32>
    %271 = tpu.matmul %266, %201, %cst_82 {dimension_numbers = #tpu.dot_dimension_numbers<[1], [0], [0], [1], [0, 0, 1, 1], [], []>} : vector<8x32xf32>, vector<32x128xf32>, vector<8x128xf32> -> vector<8x128xf32>
    %272 = arith.addf %270, %271 : vector<8x128xf32>
    %273 = arith.negf %272 : vector<8x128xf32>
    %274 = math.exp %273 : vector<8x128xf32>
    %cst_83 = arith.constant 1.000000e+00 : f32
    %275 = vector.broadcast %cst_83 : f32 to vector<8x128xf32>
    %276 = arith.addf %275, %274 : vector<8x128xf32>
    %277 = arith.divf %275, %276 : vector<8x128xf32>
    %278 = math.tanh %272 : vector<8x128xf32>
    %279 = vector.extract_strided_slice %277 {offsets = [0, 0], sizes = [8, 32], strides = [1, 1]} : vector<8x128xf32> to vector<8x32xf32>
    %280 = vector.extract_strided_slice %277 {offsets = [0, 32], sizes = [8, 32], strides = [1, 1]} : vector<8x128xf32> to vector<8x32xf32>
    %281 = vector.extract_strided_slice %278 {offsets = [0, 64], sizes = [8, 32], strides = [1, 1]} : vector<8x128xf32> to vector<8x32xf32>
    %282 = vector.extract_strided_slice %277 {offsets = [0, 96], sizes = [8, 32], strides = [1, 1]} : vector<8x128xf32> to vector<8x32xf32>
    %283 = arith.mulf %280, %264 : vector<8x32xf32>
    %284 = arith.mulf %279, %281 : vector<8x32xf32>
    %285 = arith.addf %283, %284 : vector<8x32xf32>
    %286 = math.tanh %285 : vector<8x32xf32>
    %287 = arith.mulf %282, %286 : vector<8x32xf32>
    %c4_i32_84 = arith.constant 4 : i32
    %c8_i32_85 = arith.constant 8 : i32
    %288 = arith.muli %c4_i32_84, %c8_i32_85 : i32
    %289 = tpu.assume_multiple %288, 8 : i32
    %290 = arith.index_cast %289 : i32 to index
    %c0_86 = arith.constant 0 : index
    %291 = vector.load %arg13[%290, %c0_86] : memref<64x128xf32, #tpu.memory_space<vmem>>, vector<8x128xf32>
    %cst_87 = arith.constant dense<0.000000e+00> : vector<8x128xf32>
    %292 = tpu.matmul %287, %201, %cst_87 {dimension_numbers = #tpu.dot_dimension_numbers<[1], [0], [0], [1], [0, 0, 1, 1], [], []>} : vector<8x32xf32>, vector<32x128xf32>, vector<8x128xf32> -> vector<8x128xf32>
    %293 = arith.addf %291, %292 : vector<8x128xf32>
    %294 = arith.negf %293 : vector<8x128xf32>
    %295 = math.exp %294 : vector<8x128xf32>
    %cst_88 = arith.constant 1.000000e+00 : f32
    %296 = vector.broadcast %cst_88 : f32 to vector<8x128xf32>
    %297 = arith.addf %296, %295 : vector<8x128xf32>
    %298 = arith.divf %296, %297 : vector<8x128xf32>
    %299 = math.tanh %293 : vector<8x128xf32>
    %300 = vector.extract_strided_slice %298 {offsets = [0, 0], sizes = [8, 32], strides = [1, 1]} : vector<8x128xf32> to vector<8x32xf32>
    %301 = vector.extract_strided_slice %298 {offsets = [0, 32], sizes = [8, 32], strides = [1, 1]} : vector<8x128xf32> to vector<8x32xf32>
    %302 = vector.extract_strided_slice %299 {offsets = [0, 64], sizes = [8, 32], strides = [1, 1]} : vector<8x128xf32> to vector<8x32xf32>
    %303 = vector.extract_strided_slice %298 {offsets = [0, 96], sizes = [8, 32], strides = [1, 1]} : vector<8x128xf32> to vector<8x32xf32>
    %304 = arith.mulf %301, %285 : vector<8x32xf32>
    %305 = arith.mulf %300, %302 : vector<8x32xf32>
    %306 = arith.addf %304, %305 : vector<8x32xf32>
    %307 = math.tanh %306 : vector<8x32xf32>
    %308 = arith.mulf %303, %307 : vector<8x32xf32>
    %c5_i32_89 = arith.constant 5 : i32
    %c8_i32_90 = arith.constant 8 : i32
    %309 = arith.muli %c5_i32_89, %c8_i32_90 : i32
    %310 = tpu.assume_multiple %309, 8 : i32
    %311 = arith.index_cast %310 : i32 to index
    %c0_91 = arith.constant 0 : index
    %312 = vector.load %arg13[%311, %c0_91] : memref<64x128xf32, #tpu.memory_space<vmem>>, vector<8x128xf32>
    %cst_92 = arith.constant dense<0.000000e+00> : vector<8x128xf32>
    %313 = tpu.matmul %308, %201, %cst_92 {dimension_numbers = #tpu.dot_dimension_numbers<[1], [0], [0], [1], [0, 0, 1, 1], [], []>} : vector<8x32xf32>, vector<32x128xf32>, vector<8x128xf32> -> vector<8x128xf32>
    %314 = arith.addf %312, %313 : vector<8x128xf32>
    %315 = arith.negf %314 : vector<8x128xf32>
    %316 = math.exp %315 : vector<8x128xf32>
    %cst_93 = arith.constant 1.000000e+00 : f32
    %317 = vector.broadcast %cst_93 : f32 to vector<8x128xf32>
    %318 = arith.addf %317, %316 : vector<8x128xf32>
    %319 = arith.divf %317, %318 : vector<8x128xf32>
    %320 = math.tanh %314 : vector<8x128xf32>
    %321 = vector.extract_strided_slice %319 {offsets = [0, 0], sizes = [8, 32], strides = [1, 1]} : vector<8x128xf32> to vector<8x32xf32>
    %322 = vector.extract_strided_slice %319 {offsets = [0, 32], sizes = [8, 32], strides = [1, 1]} : vector<8x128xf32> to vector<8x32xf32>
    %323 = vector.extract_strided_slice %320 {offsets = [0, 64], sizes = [8, 32], strides = [1, 1]} : vector<8x128xf32> to vector<8x32xf32>
    %324 = vector.extract_strided_slice %319 {offsets = [0, 96], sizes = [8, 32], strides = [1, 1]} : vector<8x128xf32> to vector<8x32xf32>
    %325 = arith.mulf %322, %306 : vector<8x32xf32>
    %326 = arith.mulf %321, %323 : vector<8x32xf32>
    %327 = arith.addf %325, %326 : vector<8x32xf32>
    %328 = math.tanh %327 : vector<8x32xf32>
    %329 = arith.mulf %324, %328 : vector<8x32xf32>
    %c6_i32_94 = arith.constant 6 : i32
    %c8_i32_95 = arith.constant 8 : i32
    %330 = arith.muli %c6_i32_94, %c8_i32_95 : i32
    %331 = tpu.assume_multiple %330, 8 : i32
    %332 = arith.index_cast %331 : i32 to index
    %c0_96 = arith.constant 0 : index
    %333 = vector.load %arg13[%332, %c0_96] : memref<64x128xf32, #tpu.memory_space<vmem>>, vector<8x128xf32>
    %cst_97 = arith.constant dense<0.000000e+00> : vector<8x128xf32>
    %334 = tpu.matmul %329, %201, %cst_97 {dimension_numbers = #tpu.dot_dimension_numbers<[1], [0], [0], [1], [0, 0, 1, 1], [], []>} : vector<8x32xf32>, vector<32x128xf32>, vector<8x128xf32> -> vector<8x128xf32>
    %335 = arith.addf %333, %334 : vector<8x128xf32>
    %336 = arith.negf %335 : vector<8x128xf32>
    %337 = math.exp %336 : vector<8x128xf32>
    %cst_98 = arith.constant 1.000000e+00 : f32
    %338 = vector.broadcast %cst_98 : f32 to vector<8x128xf32>
    %339 = arith.addf %338, %337 : vector<8x128xf32>
    %340 = arith.divf %338, %339 : vector<8x128xf32>
    %341 = math.tanh %335 : vector<8x128xf32>
    %342 = vector.extract_strided_slice %340 {offsets = [0, 0], sizes = [8, 32], strides = [1, 1]} : vector<8x128xf32> to vector<8x32xf32>
    %343 = vector.extract_strided_slice %340 {offsets = [0, 32], sizes = [8, 32], strides = [1, 1]} : vector<8x128xf32> to vector<8x32xf32>
    %344 = vector.extract_strided_slice %341 {offsets = [0, 64], sizes = [8, 32], strides = [1, 1]} : vector<8x128xf32> to vector<8x32xf32>
    %345 = vector.extract_strided_slice %340 {offsets = [0, 96], sizes = [8, 32], strides = [1, 1]} : vector<8x128xf32> to vector<8x32xf32>
    %346 = arith.mulf %343, %327 : vector<8x32xf32>
    %347 = arith.mulf %342, %344 : vector<8x32xf32>
    %348 = arith.addf %346, %347 : vector<8x32xf32>
    %349 = math.tanh %348 : vector<8x32xf32>
    %350 = arith.mulf %345, %349 : vector<8x32xf32>
    %c7_i32_99 = arith.constant 7 : i32
    %c8_i32_100 = arith.constant 8 : i32
    %351 = arith.muli %c7_i32_99, %c8_i32_100 : i32
    %352 = tpu.assume_multiple %351, 8 : i32
    %353 = arith.index_cast %352 : i32 to index
    %c0_101 = arith.constant 0 : index
    %354 = vector.load %arg13[%353, %c0_101] : memref<64x128xf32, #tpu.memory_space<vmem>>, vector<8x128xf32>
    %cst_102 = arith.constant dense<0.000000e+00> : vector<8x128xf32>
    %355 = tpu.matmul %350, %201, %cst_102 {dimension_numbers = #tpu.dot_dimension_numbers<[1], [0], [0], [1], [0, 0, 1, 1], [], []>} : vector<8x32xf32>, vector<32x128xf32>, vector<8x128xf32> -> vector<8x128xf32>
    %356 = arith.addf %354, %355 : vector<8x128xf32>
    %357 = arith.negf %356 : vector<8x128xf32>
    %358 = math.exp %357 : vector<8x128xf32>
    %cst_103 = arith.constant 1.000000e+00 : f32
    %359 = vector.broadcast %cst_103 : f32 to vector<8x128xf32>
    %360 = arith.addf %359, %358 : vector<8x128xf32>
    %361 = arith.divf %359, %360 : vector<8x128xf32>
    %362 = math.tanh %356 : vector<8x128xf32>
    %363 = vector.extract_strided_slice %361 {offsets = [0, 0], sizes = [8, 32], strides = [1, 1]} : vector<8x128xf32> to vector<8x32xf32>
    %364 = vector.extract_strided_slice %361 {offsets = [0, 32], sizes = [8, 32], strides = [1, 1]} : vector<8x128xf32> to vector<8x32xf32>
    %365 = vector.extract_strided_slice %362 {offsets = [0, 64], sizes = [8, 32], strides = [1, 1]} : vector<8x128xf32> to vector<8x32xf32>
    %366 = vector.extract_strided_slice %361 {offsets = [0, 96], sizes = [8, 32], strides = [1, 1]} : vector<8x128xf32> to vector<8x32xf32>
    %367 = arith.mulf %364, %348 : vector<8x32xf32>
    %368 = arith.mulf %363, %365 : vector<8x32xf32>
    %369 = arith.addf %367, %368 : vector<8x32xf32>
    %370 = math.tanh %369 : vector<8x32xf32>
    %371 = arith.mulf %366, %370 : vector<8x32xf32>
    %c8_i32_104 = arith.constant 8 : i32
    %c0_105 = arith.constant 0 : index
    %c0_106 = arith.constant 0 : index
    %372 = vector.load %arg7[%c0_105, %c0_106] : memref<32x64xf32, #tpu.memory_space<vmem>>, vector<32x64xf32>
    %cst_107 = arith.constant dense<0.000000e+00> : vector<8x64xf32>
    %373 = tpu.matmul %371, %372, %cst_107 {dimension_numbers = #tpu.dot_dimension_numbers<[1], [0], [0], [1], [0, 0, 1, 1], [], []>} : vector<8x32xf32>, vector<32x64xf32>, vector<8x64xf32> -> vector<8x64xf32>
    %c0_108 = arith.constant 0 : index
    %c0_109 = arith.constant 0 : index
    %374 = vector.load %arg8[%c0_108, %c0_109] : memref<1x64xf32, #tpu.memory_space<vmem>>, vector<1x64xf32>
    %375 = vector.broadcast %374 : vector<1x64xf32> to vector<8x64xf32>
    %376 = arith.addf %373, %375 : vector<8x64xf32>
    %377 = arith.negf %376 : vector<8x64xf32>
    %378 = math.exp %377 : vector<8x64xf32>
    %cst_110 = arith.constant 1.000000e+00 : f32
    %379 = vector.broadcast %cst_110 : f32 to vector<8x64xf32>
    %380 = arith.addf %379, %378 : vector<8x64xf32>
    %381 = arith.divf %379, %380 : vector<8x64xf32>
    %c0_111 = arith.constant 0 : index
    %c0_112 = arith.constant 0 : index
    %382 = vector.load %arg9[%c0_111, %c0_112] : memref<64x8xf32, #tpu.memory_space<vmem>>, vector<64x8xf32>
    %cst_113 = arith.constant dense<0.000000e+00> : vector<8x8xf32>
    %383 = tpu.matmul %381, %382, %cst_113 {dimension_numbers = #tpu.dot_dimension_numbers<[1], [0], [0], [1], [0, 0, 1, 1], [], []>} : vector<8x64xf32>, vector<64x8xf32>, vector<8x8xf32> -> vector<8x8xf32>
    %c0_114 = arith.constant 0 : index
    %c0_115 = arith.constant 0 : index
    %384 = vector.load %arg10[%c0_114, %c0_115] : memref<1x8xf32, #tpu.memory_space<vmem>>, vector<1x8xf32>
    %385 = vector.broadcast %384 : vector<1x8xf32> to vector<8x8xf32>
    %386 = arith.addf %383, %385 : vector<8x8xf32>
    %cst_116 = arith.constant dense<0xFF800000> : vector<8xf32>
    %387 = vector.multi_reduction <maximumf>, %386, %cst_116 [1] : vector<8x8xf32> to vector<8xf32>
    %388 = vector.shape_cast %387 : vector<8xf32> to vector<8x1xf32>
    %389 = vector.broadcast %388 : vector<8x1xf32> to vector<8x8xf32>
    %390 = arith.subf %386, %389 : vector<8x8xf32>
    %391 = math.exp %390 : vector<8x8xf32>
    %cst_117 = arith.constant dense<0.000000e+00> : vector<8xf32>
    %392 = vector.multi_reduction <add>, %391, %cst_117 [1] : vector<8x8xf32> to vector<8xf32>
    %393 = vector.shape_cast %392 : vector<8xf32> to vector<8x1xf32>
    %394 = vector.broadcast %393 : vector<8x1xf32> to vector<8x8xf32>
    %395 = arith.divf %391, %394 : vector<8x8xf32>
    %c0_118 = arith.constant 0 : index
    %c0_119 = arith.constant 0 : index
    %396 = vector.load %arg11[%c0_118, %c0_119] : memref<8x8xf32, #tpu.memory_space<vmem>>, vector<8x8xf32>
    tpu.vector_store %arg11[%c0_118, %c0_119], %395 {strides = array<i32>} : memref<8x8xf32, #tpu.memory_space<vmem>>, vector<8x8xf32>,
    return
  }
}

</mosaic_0001>

<llo_original>
// kernel: irpnet_forward.1
$region0: #{irpnet_forward.1}
  #allocation0 [shape = 'u32[]', space=smem, size = 0x4, offset = 0x4, fixed_abs, tag = 'smem constant byte address 0x4 - core index']
  #allocation1 [shape = 'u32[144,128]{1,0:T(1,128)}', space=vmem, size = 0x12000, scoped, tag = 'internal scratch']
  #allocation2 [shape = 'f32[64,32]{1,0:T(8,128)}', space=vmem, size = 0x8000, scoped, tag = 'scratch operand']
  #allocation3 [shape = 'f32[64,128]{1,0:T(8,128)}', space=vmem, size = 0x8000, scoped, tag = 'scratch operand']
  %s0 = inlined_call_operand.vmem [shape: f32[64,32], index: 0, kind: input, shape index: {}]
  %s1 = inlined_call_operand.vmem [shape: f32[32,128], index: 1, kind: input, shape index: {}]
  %s2 = inlined_call_operand.vmem [shape: f32[32,128], index: 2, kind: input, shape index: {}]
  %s3 = inlined_call_operand.vmem [shape: f32[1,128], index: 3, kind: input, shape index: {}]
  %s4 = inlined_call_operand.vmem [shape: f32[32,128], index: 4, kind: input, shape index: {}]
  %s5 = inlined_call_operand.vmem [shape: f32[32,128], index: 5, kind: input, shape index: {}]
  %s6 = inlined_call_operand.vmem [shape: f32[1,128], index: 6, kind: input, shape index: {}]
  %s7 = inlined_call_operand.vmem [shape: f32[32,64], index: 7, kind: input, shape index: {}]
  %s8 = inlined_call_operand.vmem [shape: f32[1,64], index: 8, kind: input, shape index: {}]
  %s9 = inlined_call_operand.vmem [shape: f32[64,8], index: 9, kind: input, shape index: {}]
  %s10 = inlined_call_operand.vmem [shape: f32[1,8], index: 10, kind: input, shape index: {}]
  %s11 = inlined_call_operand.hbm [shape: f32[8,8], index: 11, kind: output, shape index: {}]
  %s12 = sld [smem:[#allocation0]]
  $region54: #{irpnet_forward.1} parent=0
    _
  %s14 = ssub.s32 1, %s12
  %s15 = scalar_select 0, %s14, %s12
  $region1: #{irpnet_forward.1} parent=0
    #allocation4 [shape = 'u8[4096]{0}', space=vmem, size = 0x1000, scoped, tag = 'output window, operand 0, single buffered']
    #allocation5 [shape = 's32[1]{0}', space=sflag, size = 0x4, scoped, tag = 'scoped memory for irpnet_forward.1']
    %16 = vsyncpa [#allocation5], 0
    // Predicated region
    $region2: #{irpnet_forward.1} parent=1 // pred_check
      _
    $region3: #{irpnet_forward.1} parent=1 // pred_check_branch
      %18 = sbr.rel (0) target = $region5
    $region4: #{irpnet_forward.1} parent=1 // pred_region
      _
    $region5: #{irpnet_forward.1} parent=1 // pred_fallthru
      _
    // Predicated region
    $region6: #{irpnet_forward.1} parent=1 // pred_check
      _
    $region7: #{irpnet_forward.1} parent=1 // pred_check_branch
      %20 = sbr.rel (0) target = $region9
    $region8: #{irpnet_forward.1} parent=1 // pred_region
      _
    $region9: #{irpnet_forward.1} parent=1 // pred_fallthru
      _
    // Predicated region
    $region10: #{irpnet_forward.1} parent=1 // pred_check
      _
    $region11: #{irpnet_forward.1} parent=1 // pred_check_branch
      %22 = sbr.rel (0) target = $region13
    $region12: #{irpnet_forward.1} parent=1 // pred_region
      _
    $region13: #{irpnet_forward.1} parent=1 // pred_fallthru
      _
    // Predicated region
    $region14: #{irpnet_forward.1} parent=1 // pred_check
      _
    $region15: #{irpnet_forward.1} parent=1 // pred_check_branch
      %24 = sbr.rel (0) target = $region17
    $region16: #{irpnet_forward.1} parent=1 // pred_region
      _
    $region17: #{irpnet_forward.1} parent=1 // pred_fallthru
      _
    // Predicated region
    $region18: #{irpnet_forward.1} parent=1 // pred_check
      _
    $region19: #{irpnet_forward.1} parent=1 // pred_check_branch
      %26 = sbr.rel (0) target = $region21
    $region20: #{irpnet_forward.1} parent=1 // pred_region
      _
    $region21: #{irpnet_forward.1} parent=1 // pred_fallthru
      _
    // Predicated region
    $region22: #{irpnet_forward.1} parent=1 // pred_check
      _
    $region23: #{irpnet_forward.1} parent=1 // pred_check_branch
      %28 = sbr.rel (0) target = $region25
    $region24: #{irpnet_forward.1} parent=1 // pred_region
      _
    $region25: #{irpnet_forward.1} parent=1 // pred_fallthru
      _
    // Predicated region
    $region26: #{irpnet_forward.1} parent=1 // pred_check
      _
    $region27: #{irpnet_forward.1} parent=1 // pred_check_branch
      %30 = sbr.rel (0) target = $region29
    $region28: #{irpnet_forward.1} parent=1 // pred_region
      _
    $region29: #{irpnet_forward.1} parent=1 // pred_fallthru
      _
    // Predicated region
    $region30: #{irpnet_forward.1} parent=1 // pred_check
      _
    $region31: #{irpnet_forward.1} parent=1 // pred_check_branch
      %32 = sbr.rel (0) target = $region33
    $region32: #{irpnet_forward.1} parent=1 // pred_region
      _
    $region33: #{irpnet_forward.1} parent=1 // pred_fallthru
      _
    // Predicated region
    $region34: #{irpnet_forward.1} parent=1 // pred_check
      _
    $region35: #{irpnet_forward.1} parent=1 // pred_check_branch
      %34 = sbr.rel (0) target = $region37
    $region36: #{irpnet_forward.1} parent=1 // pred_region
      _
    $region37: #{irpnet_forward.1} parent=1 // pred_fallthru
      _
    // Predicated region
    $region38: #{irpnet_forward.1} parent=1 // pred_check
      _
    $region39: #{irpnet_forward.1} parent=1 // pred_check_branch
      %36 = sbr.rel (0) target = $region41
    $region40: #{irpnet_forward.1} parent=1 // pred_region
      _
    $region41: #{irpnet_forward.1} parent=1 // pred_fallthru
      _
    // Predicated region
    $region42: #{irpnet_forward.1} parent=1 // pred_check
      _
    $region43: #{irpnet_forward.1} parent=1 // pred_check_branch
      %38 = sbr.rel (0) target = $region45
    $region44: #{irpnet_forward.1} parent=1 // pred_region
      _
    $region45: #{irpnet_forward.1} parent=1 // pred_fallthru
      _
    %v39 = vld [vmem:[%s0] sm:$0xff]
    %v40 = vld [vmem:[%s0 + $0x8] sm:$0xff]
    %v41 = vld [vmem:[%s0 + $0x10] sm:$0xff]
    %v42 = vld [vmem:[%s0 + $0x18] sm:$0xff]
    %v43 = vld [vmem:[%s0 + $0x20] sm:$0xff]
    %v44 = vld [vmem:[%s0 + $0x28] sm:$0xff]
    %v45 = vld [vmem:[%s0 + $0x30] sm:$0xff]
    %v46 = vld [vmem:[%s0 + $0x38] sm:$0xff]
    %v47 = vld [vmem:[%s1] sm:$0xff]
    %v48 = vld [vmem:[%s1 + $0x8] sm:$0xff]
    %v49 = vld [vmem:[%s1 + $0x10] sm:$0xff]
    %v50 = vld [vmem:[%s1 + $0x18] sm:$0xff]
    %v51 = vld [vmem:[%s3] sm:$0x1]
    %v53 = vlaneseq
    %v54 = vshrl.u32 %v53, 7
    %v55 = vsub.s32 0, %v54
    %v56 = vrot.slane %v51, %v55
    %vm58 = vcmask 261120
    %v60 = vsel %vm58, %v39, 0
    %v63 = vsel %vm58, %v40, 0
    %v66 = vsel %vm58, %v41, 0
    %v69 = vsel %vm58, %v42, 0
    %v72 = vsel %vm58, %v43, 0
    %v75 = vsel %vm58, %v44, 0
    %v78 = vsel %vm58, %v45, 0
    %v81 = vsel %vm58, %v46, 0
    %83 = vmatprep.subr.mxu0 0.0
    %84 = vmatpush1.msra.mxu0 0.0
    %85 = vmatprep.subr.mxu0 0.0
    %86 = vmatpush1.msra.mxu0 0.0
    %87 = vmatprep.subr.mxu0 0.0
    %88 = vmatpush1.msra.mxu0 0.0
    %89 = vmatprep.subr.mxu0 0.0
    %90 = vmatpush1.msra.mxu0 0.0
    %91 = vmatprep.subr.mxu0 0.0
    %92 = vmatpush1.msra.mxu0 0.0
    %93 = vmatprep.subr.mxu0 0.0
    %94 = vmatpush1.msra.mxu0 0.0
    %95 = vmatprep.subr.mxu0 0.0
    %96 = vmatpush1.msra.mxu0 0.0
    %97 = vmatprep.subr.mxu0 0.0
    %98 = vmatpush1.msra.mxu0 0.0
    %99 = vmatprep.subr.mxu0 0.0
    %100 = vmatpush1.msra.mxu0 0.0
    %101 = vmatprep.subr.mxu0 0.0
    %102 = vmatpush1.msra.mxu0 0.0
    %103 = vmatprep.subr.mxu0 0.0
    %104 = vmatpush1.msra.mxu0 0.0
    %105 = vmatprep.subr.mxu0 0.0
    %106 = vmatpush1.msra.mxu0 0.0
    %107 = vmatprep.subr.mxu0 0.0
    %108 = vmatpush1.msra.mxu0 %v50
    %109 = vmatprep.subr.mxu0 0.0
    %110 = vmatpush1.msra.mxu0 %v49
    %111 = vmatprep.subr.mxu0 0.0
    %112 = vmatpush1.msra.mxu0 %v48
    %113 = vmatprep.subr.mxu0 0.0
    %114 = vmatpush1.msra.mxu0 %v47
    %115 = vmatprep.subr.mxu0 0.0
    %116 = vmatpush2.msra.mxu0 0.0
    %117 = vmatprep.subr.mxu0 0.0
    %118 = vmatpush2.msra.mxu0 0.0
    %119 = vmatprep.subr.mxu0 0.0
    %120 = vmatpush2.msra.mxu0 0.0
    %121 = vmatprep.subr.mxu0 0.0
    %122 = vmatpush2.msra.mxu0 0.0
    %123 = vmatprep.subr.mxu0 0.0
    %124 = vmatpush2.msra.mxu0 0.0
    %125 = vmatprep.subr.mxu0 0.0
    %126 = vmatpush2.msra.mxu0 0.0
    %127 = vmatprep.subr.mxu0 0.0
    %128 = vmatpush2.msra.mxu0 0.0
    %129 = vmatprep.subr.mxu0 0.0
    %130 = vmatpush2.msra.mxu0 0.0
    %131 = vmatprep.subr.mxu0 0.0
    %132 = vmatpush2.msra.mxu0 0.0
    %133 = vmatprep.subr.mxu0 0.0
    %134 = vmatpush2.msra.mxu0 0.0
    %135 = vmatprep.subr.mxu0 0.0
    %136 = vmatpush2.msra.mxu0 0.0
    %137 = vmatprep.subr.mxu0 0.0
    %138 = vmatpush2.msra.mxu0 0.0
    %139 = vmatprep.subr.mxu0 0.0
    %140 = vmatpush2.msra.mxu0 0.0
    %141 = vmatprep.subr.mxu0 0.0
    %142 = vmatpush2.msra.mxu0 0.0
    %143 = vmatprep.subr.mxu0 0.0
    %144 = vmatpush2.msra.mxu0 0.0
    %145 = vmatprep.subr.mxu0 0.0
    %146 = vmatpush2.msra.mxu0 0.0
    %147 = vmatprep.mubr.f32.mxu0 0.0
    %148 = vmatmul.mubr.f32.gmra.mxu0 %v60
    %v149 = vpop.f32.mrf.mxu0
    %v150 = vadd.f32 %v56, %v149
    %v151 = vpop.f32.mrf.mxu0
    %152 = vmatprep.mubr.f32.mxu0 0.0
    %153 = vmatmul.mubr.f32.gmra.mxu0 %v63
    %v154 = vpop.f32.mrf.mxu0
    %v155 = vadd.f32 %v56, %v154
    %v156 = vpop.f32.mrf.mxu0
    %157 = vmatprep.mubr.f32.mxu0 0.0
    %158 = vmatmul.mubr.f32.gmra.mxu0 %v66
    %v159 = vpop.f32.mrf.mxu0
    %v160 = vadd.f32 %v56, %v159
    %v161 = vpop.f32.mrf.mxu0
    %162 = vmatprep.mubr.f32.mxu0 0.0
    %163 = vmatmul.mubr.f32.gmra.mxu0 %v69
    %v164 = vpop.f32.mrf.mxu0
    %v165 = vadd.f32 %v56, %v164
    %v166 = vpop.f32.mrf.mxu0
    %167 = vmatprep.mubr.f32.mxu0 0.0
    %168 = vmatmul.mubr.f32.gmra.mxu0 %v72
    %v169 = vpop.f32.mrf.mxu0
    %v170 = vadd.f32 %v56, %v169
    %v171 = vpop.f32.mrf.mxu0
    %172 = vmatprep.mubr.f32.mxu0 0.0
    %173 = vmatmul.mubr.f32.gmra.mxu0 %v75
    %v174 = vpop.f32.mrf.mxu0
    %v175 = vadd.f32 %v56, %v174
    %v176 = vpop.f32.mrf.mxu0
    %177 = vmatprep.mubr.f32.mxu0 0.0
    %178 = vmatmul.mubr.f32.gmra.mxu0 %v78
    %v179 = vpop.f32.mrf.mxu0
    %v180 = vadd.f32 %v56, %v179
    %v181 = vpop.f32.mrf.mxu0
    %182 = vmatprep.mubr.f32.mxu0 0.0
    %183 = vmatmul.mubr.f32.gmra.mxu0 %v81
    %v184 = vpop.f32.mrf.mxu0
    %v185 = vadd.f32 %v56, %v184
    %v186 = vpop.f32.mrf.mxu0
    %187 = vdwg.mxu0
    %188 = vst [vmem:[#allocation3] sm:$0xff] %v150
    %189 = vst [vmem:[#allocation3 + $0x8] sm:$0xff] %v155
    %190 = vst [vmem:[#allocation3 + $0x10] sm:$0xff] %v160
    %191 = vst [vmem:[#allocation3 + $0x18] sm:$0xff] %v165
    %192 = vst [vmem:[#allocation3 + $0x20] sm:$0xff] %v170
    %193 = vst [vmem:[#allocation3 + $0x28] sm:$0xff] %v175
    %194 = vst [vmem:[#allocation3 + $0x30] sm:$0xff] %v180
    %195 = vst [vmem:[#allocation3 + $0x38] sm:$0xff] %v185
    %v196 = vld [vmem:[%s2] sm:$0xff]
    %v197 = vld [vmem:[%s2 + $0x8] sm:$0xff]
    %v198 = vld [vmem:[%s2 + $0x10] sm:$0xff]
    %v199 = vld [vmem:[%s2 + $0x18] sm:$0xff]
    %v200 = vld [vmem:[#allocation3] sm:$0xff]
    %v202 = vsel %vm58, 0.0, 0
    %204 = vmatprep.subr.mxu0 0.0
    %205 = vmatpush1.msra.mxu0 0.0
    %206 = vmatprep.subr.mxu0 0.0
    %207 = vmatpush1.msra.mxu0 0.0
    %208 = vmatprep.subr.mxu0 0.0
    %209 = vmatpush1.msra.mxu0 0.0
    %210 = vmatprep.subr.mxu0 0.0
    %211 = vmatpush1.msra.mxu0 0.0
    %212 = vmatprep.subr.mxu0 0.0
    %213 = vmatpush1.msra.mxu0 0.0
    %214 = vmatprep.subr.mxu0 0.0
    %215 = vmatpush1.msra.mxu0 0.0
    %216 = vmatprep.subr.mxu0 0.0
    %217 = vmatpush1.msra.mxu0 0.0
    %218 = vmatprep.subr.mxu0 0.0
    %219 = vmatpush1.msra.mxu0 0.0
    %220 = vmatprep.subr.mxu0 0.0
    %221 = vmatpush1.msra.mxu0 0.0
    %222 = vmatprep.subr.mxu0 0.0
    %223 = vmatpush1.msra.mxu0 0.0
    %224 = vmatprep.subr.mxu0 0.0
    %225 = vmatpush1.msra.mxu0 0.0
    %226 = vmatprep.subr.mxu0 0.0
    %227 = vmatpush1.msra.mxu0 0.0
    %228 = vmatprep.subr.mxu0 0.0
    %229 = vmatpush1.msra.mxu0 %v199
    %230 = vmatprep.subr.mxu0 0.0
    %231 = vmatpush1.msra.mxu0 %v198
    %232 = vmatprep.subr.mxu0 0.0
    %233 = vmatpush1.msra.mxu0 %v197
    %234 = vmatprep.subr.mxu0 0.0
    %235 = vmatpush1.msra.mxu0 %v196
    %236 = vmatprep.subr.mxu0 0.0
    %237 = vmatpush2.msra.mxu0 0.0
    %238 = vmatprep.subr.mxu0 0.0
    %239 = vmatpush2.msra.mxu0 0.0
    %240 = vmatprep.subr.mxu0 0.0
    %241 = vmatpush2.msra.mxu0 0.0
    %242 = vmatprep.subr.mxu0 0.0
    %243 = vmatpush2.msra.mxu0 0.0
    %244 = vmatprep.subr.mxu0 0.0
    %245 = vmatpush2.msra.mxu0 0.0
    %246 = vmatprep.subr.mxu0 0.0
    %247 = vmatpush2.msra.mxu0 0.0
    %248 = vmatprep.subr.mxu0 0.0
    %249 = vmatpush2.msra.mxu0 0.0
    %250 = vmatprep.subr.mxu0 0.0
    %251 = vmatpush2.msra.mxu0 0.0
    %252 = vmatprep.subr.mxu0 0.0
    %253 = vmatpush2.msra.mxu0 0.0
    %254 = vmatprep.subr.mxu0 0.0
    %255 = vmatpush2.msra.mxu0 0.0
    %256 = vmatprep.subr.mxu0 0.0
    %257 = vmatpush2.msra.mxu0 0.0
    %258 = vmatprep.subr.mxu0 0.0
    %259 = vmatpush2.msra.mxu0 0.0
    %260 = vmatprep.subr.mxu0 0.0
    %261 = vmatpush2.msra.mxu0 0.0
    %262 = vmatprep.subr.mxu0 0.0
    %263 = vmatpush2.msra.mxu0 0.0
    %264 = vmatprep.subr.mxu0 0.0
    %265 = vmatpush2.msra.mxu0 0.0
    %266 = vmatprep.subr.mxu0 0.0
    %267 = vmatpush2.msra.mxu0 0.0
    %268 = vmatprep.mubr.f32.mxu0 0.0
    %269 = vmatmul.mubr.f32.gmra.mxu0 %v202
    %v270 = vpop.f32.mrf.mxu0
    %v271 = vadd.f32 0.0, %v270
    %v272 = vpop.f32.mrf.mxu0
    %273 = vdwg.mxu0
    %v274 = vadd.f32 %v200, %v271
    %v275 = vxor.u32 %v274, 2147483648
    %v276 = vmul.f32 %v275, 1.442695
    %v277 = vpow.pop %v276
    %v278 = vadd.f32 %v277, 1.0
    %v279 = vrcp.pop %v278
    %v280 = vmul.f32 1.0, %v279
    %v281 = vtanh.pop %v274
    %v282 = vmul.f32 %v280, 0.0
    %284 = vrot.lane.b32.xlu0 %v281, 64
    %v285 = vpop.permute.xlu0 %284
    %v287 = vmul.f32 %v280, %v285
    %289 = vrot.lane.b32.xlu0 %v287, 32
    %v290 = vpop.permute.xlu0 %289
    %v292 = vadd.f32 %v282, %v290
    %v293 = vtanh.pop %v292
    %295 = vrot.lane.b32.xlu0 %v293, 64
    %v296 = vpop.permute.xlu0 %295
    %v298 = vmul.f32 %v280, %v296
    %300 = vrot.lane.b32.xlu0 %v298, 32
    %v301 = vpop.permute.xlu0 %300
    %303 = vst.msk [vmem:[#allocation2] sm:$0xff] %vm58, %v301
    %s304 = scalar_lea.vmem [#allocation3], 8
    %v305 = vld [vmem:[%s304] sm:$0xff]
    %v306 = vsel %vm58, %v301, 0
    %308 = vmatprep.subr.mxu0 0.0
    %309 = vmatpush1.msra.mxu0 0.0
    %310 = vmatprep.subr.mxu0 0.0
    %311 = vmatpush1.msra.mxu0 0.0
    %312 = vmatprep.subr.mxu0 0.0
    %313 = vmatpush1.msra.mxu0 0.0
    %314 = vmatprep.subr.mxu0 0.0
    %315 = vmatpush1.msra.mxu0 0.0
    %316 = vmatprep.subr.mxu0 0.0
    %317 = vmatpush1.msra.mxu0 0.0
    %318 = vmatprep.subr.mxu0 0.0
    %319 = vmatpush1.msra.mxu0 0.0
    %320 = vmatprep.subr.mxu0 0.0
    %321 = vmatpush1.msra.mxu0 0.0
    %322 = vmatprep.subr.mxu0 0.0
    %323 = vmatpush1.msra.mxu0 0.0
    %324 = vmatprep.subr.mxu0 0.0
    %325 = vmatpush1.msra.mxu0 0.0
    %326 = vmatprep.subr.mxu0 0.0
    %327 = vmatpush1.msra.mxu0 0.0
    %328 = vmatprep.subr.mxu0 0.0
    %329 = vmatpush1.msra.mxu0 0.0
    %330 = vmatprep.subr.mxu0 0.0
    %331 = vmatpush1.msra.mxu0 0.0
    %332 = vmatprep.subr.mxu0 0.0
    %333 = vmatpush1.msra.mxu0 %v199
    %334 = vmatprep.subr.mxu0 0.0
    %335 = vmatpush1.msra.mxu0 %v198
    %336 = vmatprep.subr.mxu0 0.0
    %337 = vmatpush1.msra.mxu0 %v197
    %338 = vmatprep.subr.mxu0 0.0
    %339 = vmatpush1.msra.mxu0 %v196
    %340 = vmatprep.subr.mxu0 0.0
    %341 = vmatpush2.msra.mxu0 0.0
    %342 = vmatprep.subr.mxu0 0.0
    %343 = vmatpush2.msra.mxu0 0.0
    %344 = vmatprep.subr.mxu0 0.0
    %345 = vmatpush2.msra.mxu0 0.0
    %346 = vmatprep.subr.mxu0 0.0
    %347 = vmatpush2.msra.mxu0 0.0
    %348 = vmatprep.subr.mxu0 0.0
    %349 = vmatpush2.msra.mxu0 0.0
    %350 = vmatprep.subr.mxu0 0.0
    %351 = vmatpush2.msra.mxu0 0.0
    %352 = vmatprep.subr.mxu0 0.0
    %353 = vmatpush2.msra.mxu0 0.0
    %354 = vmatprep.subr.mxu0 0.0
    %355 = vmatpush2.msra.mxu0 0.0
    %356 = vmatprep.subr.mxu0 0.0
    %357 = vmatpush2.msra.mxu0 0.0
    %358 = vmatprep.subr.mxu0 0.0
    %359 = vmatpush2.msra.mxu0 0.0
    %360 = vmatprep.subr.mxu0 0.0
    %361 = vmatpush2.msra.mxu0 0.0
    %362 = vmatprep.subr.mxu0 0.0
    %363 = vmatpush2.msra.mxu0 0.0
    %364 = vmatprep.subr.mxu0 0.0
    %365 = vmatpush2.msra.mxu0 0.0
    %366 = vmatprep.subr.mxu0 0.0
    %367 = vmatpush2.msra.mxu0 0.0
    %368 = vmatprep.subr.mxu0 0.0
    %369 = vmatpush2.msra.mxu0 0.0
    %370 = vmatprep.subr.mxu0 0.0
    %371 = vmatpush2.msra.mxu0 0.0
    %372 = vmatprep.mubr.f32.mxu0 0.0
    %373 = vmatmul.mubr.f32.gmra.mxu0 %v306
    %v374 = vpop.f32.mrf.mxu0
    %v375 = vadd.f32 0.0, %v374
    %v376 = vpop.f32.mrf.mxu0
    %377 = vdwg.mxu0
    %v378 = vadd.f32 %v305, %v375
    %v379 = vxor.u32 %v378, 2147483648
    %v380 = vmul.f32 %v379, 1.442695
    %v381 = vpow.pop %v380
    %v382 = vadd.f32 %v381, 1.0
    %v383 = vrcp.pop %v382
    %v384 = vmul.f32 1.0, %v383
    %v385 = vtanh.pop %v378
    %v386 = vmul.f32 %v384, %v292
    %388 = vrot.lane.b32.xlu0 %v385, 64
    %v389 = vpop.permute.xlu0 %388
    %v391 = vmul.f32 %v384, %v389
    %393 = vrot.lane.b32.xlu0 %v391, 32
    %v394 = vpop.permute.xlu0 %393
    %v396 = vadd.f32 %v386, %v394
    %v397 = vtanh.pop %v396
    %399 = vrot.lane.b32.xlu0 %v397, 64
    %v400 = vpop.permute.xlu0 %399
    %v402 = vmul.f32 %v384, %v400
    %404 = vrot.lane.b32.xlu0 %v402, 32
    %v405 = vpop.permute.xlu0 %404
    %s407 = scalar_lea.vmem [#allocation2], 8
    %408 = vst.msk [vmem:[%s407] sm:$0xff] %vm58, %v405
    %s409 = scalar_lea.vmem [#allocation3], 16
    %v410 = vld [vmem:[%s409] sm:$0xff]
    %v411 = vsel %vm58, %v405, 0
    %413 = vmatprep.subr.mxu0 0.0
    %414 = vmatpush1.msra.mxu0 0.0
    %415 = vmatprep.subr.mxu0 0.0
    %416 = vmatpush1.msra.mxu0 0.0
    %417 = vmatprep.subr.mxu0 0.0
    %418 = vmatpush1.msra.mxu0 0.0
    %419 = vmatprep.subr.mxu0 0.0
    %420 = vmatpush1.msra.mxu0 0.0
    %421 = vmatprep.subr.mxu0 0.0
    %422 = vmatpush1.msra.mxu0 0.0
    %423 = vmatprep.subr.mxu0 0.0
    %424 = vmatpush1.msra.mxu0 0.0
    %425 = vmatprep.subr.mxu0 0.0
    %426 = vmatpush1.msra.mxu0 0.0
    %427 = vmatprep.subr.mxu0 0.0
    %428 = vmatpush1.msra.mxu0 0.0
    %429 = vmatprep.subr.mxu0 0.0
    %430 = vmatpush1.msra.mxu0 0.0
    %431 = vmatprep.subr.mxu0 0.0
    %432 = vmatpush1.msra.mxu0 0.0
    %433 = vmatprep.subr.mxu0 0.0
    %434 = vmatpush1.msra.mxu0 0.0
    %435 = vmatprep.subr.mxu0 0.0
    %436 = vmatpush1.msra.mxu0 0.0
    %437 = vmatprep.subr.mxu0 0.0
    %438 = vmatpush1.msra.mxu0 %v199
    %439 = vmatprep.subr.mxu0 0.0
    %440 = vmatpush1.msra.mxu0 %v198
    %441 = vmatprep.subr.mxu0 0.0
    %442 = vmatpush1.msra.mxu0 %v197
    %443 = vmatprep.subr.mxu0 0.0
    %444 = vmatpush1.msra.mxu0 %v196
    %445 = vmatprep.subr.mxu0 0.0
    %446 = vmatpush2.msra.mxu0 0.0
    %447 = vmatprep.subr.mxu0 0.0
    %448 = vmatpush2.msra.mxu0 0.0
    %449 = vmatprep.subr.mxu0 0.0
    %450 = vmatpush2.msra.mxu0 0.0
    %451 = vmatprep.subr.mxu0 0.0
    %452 = vmatpush2.msra.mxu0 0.0
    %453 = vmatprep.subr.mxu0 0.0
    %454 = vmatpush2.msra.mxu0 0.0
    %455 = vmatprep.subr.mxu0 0.0
    %456 = vmatpush2.msra.mxu0 0.0
    %457 = vmatprep.subr.mxu0 0.0
    %458 = vmatpush2.msra.mxu0 0.0
    %459 = vmatprep.subr.mxu0 0.0
    %460 = vmatpush2.msra.mxu0 0.0
    %461 = vmatprep.subr.mxu0 0.0
    %462 = vmatpush2.msra.mxu0 0.0
    %463 = vmatprep.subr.mxu0 0.0
    %464 = vmatpush2.msra.mxu0 0.0
    %465 = vmatprep.subr.mxu0 0.0
    %466 = vmatpush2.msra.mxu0 0.0
    %467 = vmatprep.subr.mxu0 0.0
    %468 = vmatpush2.msra.mxu0 0.0
    %469 = vmatprep.subr.mxu0 0.0
    %470 = vmatpush2.msra.mxu0 0.0
    %471 = vmatprep.subr.mxu0 0.0
    %472 = vmatpush2.msra.mxu0 0.0
    %473 = vmatprep.subr.mxu0 0.0
    %474 = vmatpush2.msra.mxu0 0.0
    %475 = vmatprep.subr.mxu0 0.0
    %476 = vmatpush2.msra.mxu0 0.0
    %477 = vmatprep.mubr.f32.mxu0 0.0
    %478 = vmatmul.mubr.f32.gmra.mxu0 %v411
    %v479 = vpop.f32.mrf.mxu0
    %v480 = vadd.f32 0.0, %v479
    %v481 = vpop.f32.mrf.mxu0
    %482 = vdwg.mxu0
    %v483 = vadd.f32 %v410, %v480
    %v484 = vxor.u32 %v483, 2147483648
    %v485 = vmul.f32 %v484, 1.442695
    %v486 = vpow.pop %v485
    %v487 = vadd.f32 %v486, 1.0
    %v488 = vrcp.pop %v487
    %v489 = vmul.f32 1.0, %v488
    %v490 = vtanh.pop %v483
    %v491 = vmul.f32 %v489, %v396
    %493 = vrot.lane.b32.xlu0 %v490, 64
    %v494 = vpop.permute.xlu0 %493
    %v496 = vmul.f32 %v489, %v494
    %498 = vrot.lane.b32.xlu0 %v496, 32
    %v499 = vpop.permute.xlu0 %498
    %v501 = vadd.f32 %v491, %v499
    %v502 = vtanh.pop %v501
    %504 = vrot.lane.b32.xlu0 %v502, 64
    %v505 = vpop.permute.xlu0 %504
    %v507 = vmul.f32 %v489, %v505
    %509 = vrot.lane.b32.xlu0 %v507, 32
    %v510 = vpop.permute.xlu0 %509
    %s512 = scalar_lea.vmem [#allocation2], 16
    %513 = vst.msk [vmem:[%s512] sm:$0xff] %vm58, %v510
    %s514 = scalar_lea.vmem [#allocation3], 24
    %v515 = vld [vmem:[%s514] sm:$0xff]
    %v516 = vsel %vm58, %v510, 0
    %518 = vmatprep.subr.mxu0 0.0
    %519 = vmatpush1.msra.mxu0 0.0
    %520 = vmatprep.subr.mxu0 0.0
    %521 = vmatpush1.msra.mxu0 0.0
    %522 = vmatprep.subr.mxu0 0.0
    %523 = vmatpush1.msra.mxu0 0.0
    %524 = vmatprep.subr.mxu0 0.0
    %525 = vmatpush1.msra.mxu0 0.0
    %526 = vmatprep.subr.mxu0 0.0
    %527 = vmatpush1.msra.mxu0 0.0
    %528 = vmatprep.subr.mxu0 0.0
    %529 = vmatpush1.msra.mxu0 0.0
    %530 = vmatprep.subr.mxu0 0.0
    %531 = vmatpush1.msra.mxu0 0.0
    %532 = vmatprep.subr.mxu0 0.0
    %533 = vmatpush1.msra.mxu0 0.0
    %534 = vmatprep.subr.mxu0 0.0
    %535 = vmatpush1.msra.mxu0 0.0
    %536 = vmatprep.subr.mxu0 0.0
    %537 = vmatpush1.msra.mxu0 0.0
    %538 = vmatprep.subr.mxu0 0.0
    %539 = vmatpush1.msra.mxu0 0.0
    %540 = vmatprep.subr.mxu0 0.0
    %541 = vmatpush1.msra.mxu0 0.0
    %542 = vmatprep.subr.mxu0 0.0
    %543 = vmatpush1.msra.mxu0 %v199
    %544 = vmatprep.subr.mxu0 0.0
    %545 = vmatpush1.msra.mxu0 %v198
    %546 = vmatprep.subr.mxu0 0.0
    %547 = vmatpush1.msra.mxu0 %v197
    %548 = vmatprep.subr.mxu0 0.0
    %549 = vmatpush1.msra.mxu0 %v196
    %550 = vmatprep.subr.mxu0 0.0
    %551 = vmatpush2.msra.mxu0 0.0
    %552 = vmatprep.subr.mxu0 0.0
    %553 = vmatpush2.msra.mxu0 0.0
    %554 = vmatprep.subr.mxu0 0.0
    %555 = vmatpush2.msra.mxu0 0.0
    %556 = vmatprep.subr.mxu0 0.0
    %557 = vmatpush2.msra.mxu0 0.0
    %558 = vmatprep.subr.mxu0 0.0
    %559 = vmatpush2.msra.mxu0 0.0
    %560 = vmatprep.subr.mxu0 0.0
    %561 = vmatpush2.msra.mxu0 0.0
    %562 = vmatprep.subr.mxu0 0.0
    %563 = vmatpush2.msra.mxu0 0.0
    %564 = vmatprep.subr.mxu0 0.0
    %565 = vmatpush2.msra.mxu0 0.0
    %566 = vmatprep.subr.mxu0 0.0
    %567 = vmatpush2.msra.mxu0 0.0
    %568 = vmatprep.subr.mxu0 0.0
    %569 = vmatpush2.msra.mxu0 0.0
    %570 = vmatprep.subr.mxu0 0.0
    %571 = vmatpush2.msra.mxu0 0.0
    %572 = vmatprep.subr.mxu0 0.0
    %573 = vmatpush2.msra.mxu0 0.0
    %574 = vmatprep.subr.mxu0 0.0
    %575 = vmatpush2.msra.mxu0 0.0
    %576 = vmatprep.subr.mxu0 0.0
    %577 = vmatpush2.msra.mxu0 0.0
    %578 = vmatprep.subr.mxu0 0.0
    %579 = vmatpush2.msra.mxu0 0.0
    %580 = vmatprep.subr.mxu0 0.0
    %581 = vmatpush2.msra.mxu0 0.0
    %582 = vmatprep.mubr.f32.mxu0 0.0
    %583 = vmatmul.mubr.f32.gmra.mxu0 %v516
    %v584 = vpop.f32.mrf.mxu0
    %v585 = vadd.f32 0.0, %v584
    %v586 = vpop.f32.mrf.mxu0
    %587 = vdwg.mxu0
    %v588 = vadd.f32 %v515, %v585
    %v589 = vxor.u32 %v588, 2147483648
    %v590 = vmul.f32 %v589, 1.442695
    %v591 = vpow.pop %v590
    %v592 = vadd.f32 %v591, 1.0
    %v593 = vrcp.pop %v592
    %v594 = vmul.f32 1.0, %v593
    %v595 = vtanh.pop %v588
    %v596 = vmul.f32 %v594, %v501
    %598 = vrot.lane.b32.xlu0 %v595, 64
    %v599 = vpop.permute.xlu0 %598
    %v601 = vmul.f32 %v594, %v599
    %603 = vrot.lane.b32.xlu0 %v601, 32
    %v604 = vpop.permute.xlu0 %603
    %v606 = vadd.f32 %v596, %v604
    %v607 = vtanh.pop %v606
    %609 = vrot.lane.b32.xlu0 %v607, 64
    %v610 = vpop.permute.xlu0 %609
    %v612 = vmul.f32 %v594, %v610
    %614 = vrot.lane.b32.xlu0 %v612, 32
    %v615 = vpop.permute.xlu0 %614
    %s617 = scalar_lea.vmem [#allocation2], 24
    %618 = vst.msk [vmem:[%s617] sm:$0xff] %vm58, %v615
    %s619 = scalar_lea.vmem [#allocation3], 32
    %v620 = vld [vmem:[%s619] sm:$0xff]
    %v621 = vsel %vm58, %v615, 0
    %623 = vmatprep.subr.mxu0 0.0
    %624 = vmatpush1.msra.mxu0 0.0
    %625 = vmatprep.subr.mxu0 0.0
    %626 = vmatpush1.msra.mxu0 0.0
    %627 = vmatprep.subr.mxu0 0.0
    %628 = vmatpush1.msra.mxu0 0.0
    %629 = vmatprep.subr.mxu0 0.0
    %630 = vmatpush1.msra.mxu0 0.0
    %631 = vmatprep.subr.mxu0 0.0
    %632 = vmatpush1.msra.mxu0 0.0
    %633 = vmatprep.subr.mxu0 0.0
    %634 = vmatpush1.msra.mxu0 0.0
    %635 = vmatprep.subr.mxu0 0.0
    %636 = vmatpush1.msra.mxu0 0.0
    %637 = vmatprep.subr.mxu0 0.0
    %638 = vmatpush1.msra.mxu0 0.0
    %639 = vmatprep.subr.mxu0 0.0
    %640 = vmatpush1.msra.mxu0 0.0
    %641 = vmatprep.subr.mxu0 0.0
    %642 = vmatpush1.msra.mxu0 0.0
    %643 = vmatprep.subr.mxu0 0.0
    %644 = vmatpush1.msra.mxu0 0.0
    %645 = vmatprep.subr.mxu0 0.0
    %646 = vmatpush1.msra.mxu0 0.0
    %647 = vmatprep.subr.mxu0 0.0
    %648 = vmatpush1.msra.mxu0 %v199
    %649 = vmatprep.subr.mxu0 0.0
    %650 = vmatpush1.msra.mxu0 %v198
    %651 = vmatprep.subr.mxu0 0.0
    %652 = vmatpush1.msra.mxu0 %v197
    %653 = vmatprep.subr.mxu0 0.0
    %654 = vmatpush1.msra.mxu0 %v196
    %655 = vmatprep.subr.mxu0 0.0
    %656 = vmatpush2.msra.mxu0 0.0
    %657 = vmatprep.subr.mxu0 0.0
    %658 = vmatpush2.msra.mxu0 0.0
    %659 = vmatprep.subr.mxu0 0.0
    %660 = vmatpush2.msra.mxu0 0.0
    %661 = vmatprep.subr.mxu0 0.0
    %662 = vmatpush2.msra.mxu0 0.0
    %663 = vmatprep.subr.mxu0 0.0
    %664 = vmatpush2.msra.mxu0 0.0
    %665 = vmatprep.subr.mxu0 0.0
    %666 = vmatpush2.msra.mxu0 0.0
    %667 = vmatprep.subr.mxu0 0.0
    %668 = vmatpush2.msra.mxu0 0.0
    %669 = vmatprep.subr.mxu0 0.0
    %670 = vmatpush2.msra.mxu0 0.0
    %671 = vmatprep.subr.mxu0 0.0
    %672 = vmatpush2.msra.mxu0 0.0
    %673 = vmatprep.subr.mxu0 0.0
    %674 = vmatpush2.msra.mxu0 0.0
    %675 = vmatprep.subr.mxu0 0.0
    %676 = vmatpush2.msra.mxu0 0.0
    %677 = vmatprep.subr.mxu0 0.0
    %678 = vmatpush2.msra.mxu0 0.0
    %679 = vmatprep.subr.mxu0 0.0
    %680 = vmatpush2.msra.mxu0 0.0
    %681 = vmatprep.subr.mxu0 0.0
    %682 = vmatpush2.msra.mxu0 0.0
    %683 = vmatprep.subr.mxu0 0.0
    %684 = vmatpush2.msra.mxu0 0.0
    %685 = vmatprep.subr.mxu0 0.0
    %686 = vmatpush2.msra.mxu0 0.0
    %687 = vmatprep.mubr.f32.mxu0 0.0
    %688 = vmatmul.mubr.f32.gmra.mxu0 %v621
    %v689 = vpop.f32.mrf.mxu0
    %v690 = vadd.f32 0.0, %v689
    %v691 = vpop.f32.mrf.mxu0
    %692 = vdwg.mxu0
    %v693 = vadd.f32 %v620, %v690
    %v694 = vxor.u32 %v693, 2147483648
    %v695 = vmul.f32 %v694, 1.442695
    %v696 = vpow.pop %v695
    %v697 = vadd.f32 %v696, 1.0
    %v698 = vrcp.pop %v697
    %v699 = vmul.f32 1.0, %v698
    %v700 = vtanh.pop %v693
    %v701 = vmul.f32 %v699, %v606
    %703 = vrot.lane.b32.xlu0 %v700, 64
    %v704 = vpop.permute.xlu0 %703
    %v706 = vmul.f32 %v699, %v704
    %708 = vrot.lane.b32.xlu0 %v706, 32
    %v709 = vpop.permute.xlu0 %708
    %v711 = vadd.f32 %v701, %v709
    %v712 = vtanh.pop %v711
    %714 = vrot.lane.b32.xlu0 %v712, 64
    %v715 = vpop.permute.xlu0 %714
    %v717 = vmul.f32 %v699, %v715
    %719 = vrot.lane.b32.xlu0 %v717, 32
    %v720 = vpop.permute.xlu0 %719
    %s722 = scalar_lea.vmem [#allocation2], 32
    %723 = vst.msk [vmem:[%s722] sm:$0xff] %vm58, %v720
    %s724 = scalar_lea.vmem [#allocation3], 40
    %v725 = vld [vmem:[%s724] sm:$0xff]
    %v726 = vsel %vm58, %v720, 0
    %728 = vmatprep.subr.mxu0 0.0
    %729 = vmatpush1.msra.mxu0 0.0
    %730 = vmatprep.subr.mxu0 0.0
    %731 = vmatpush1.msra.mxu0 0.0
    %732 = vmatprep.subr.mxu0 0.0
    %733 = vmatpush1.msra.mxu0 0.0
    %734 = vmatprep.subr.mxu0 0.0
    %735 = vmatpush1.msra.mxu0 0.0
    %736 = vmatprep.subr.mxu0 0.0
    %737 = vmatpush1.msra.mxu0 0.0
    %738 = vmatprep.subr.mxu0 0.0
    %739 = vmatpush1.msra.mxu0 0.0
    %740 = vmatprep.subr.mxu0 0.0
    %741 = vmatpush1.msra.mxu0 0.0
    %742 = vmatprep.subr.mxu0 0.0
    %743 = vmatpush1.msra.mxu0 0.0
    %744 = vmatprep.subr.mxu0 0.0
    %745 = vmatpush1.msra.mxu0 0.0
    %746 = vmatprep.subr.mxu0 0.0
    %747 = vmatpush1.msra.mxu0 0.0
    %748 = vmatprep.subr.mxu0 0.0
    %749 = vmatpush1.msra.mxu0 0.0
    %750 = vmatprep.subr.mxu0 0.0
    %751 = vmatpush1.msra.mxu0 0.0
    %752 = vmatprep.subr.mxu0 0.0
    %753 = vmatpush1.msra.mxu0 %v199
    %754 = vmatprep.subr.mxu0 0.0
    %755 = vmatpush1.msra.mxu0 %v198
    %756 = vmatprep.subr.mxu0 0.0
    %757 = vmatpush1.msra.mxu0 %v197
    %758 = vmatprep.subr.mxu0 0.0
    %759 = vmatpush1.msra.mxu0 %v196
    %760 = vmatprep.subr.mxu0 0.0
    %761 = vmatpush2.msra.mxu0 0.0
    %762 = vmatprep.subr.mxu0 0.0
    %763 = vmatpush2.msra.mxu0 0.0
    %764 = vmatprep.subr.mxu0 0.0
    %765 = vmatpush2.msra.mxu0 0.0
    %766 = vmatprep.subr.mxu0 0.0
    %767 = vmatpush2.msra.mxu0 0.0
    %768 = vmatprep.subr.mxu0 0.0
    %769 = vmatpush2.msra.mxu0 0.0
    %770 = vmatprep.subr.mxu0 0.0
    %771 = vmatpush2.msra.mxu0 0.0
    %772 = vmatprep.subr.mxu0 0.0
    %773 = vmatpush2.msra.mxu0 0.0
    %774 = vmatprep.subr.mxu0 0.0
    %775 = vmatpush2.msra.mxu0 0.0
    %776 = vmatprep.subr.mxu0 0.0
    %777 = vmatpush2.msra.mxu0 0.0
    %778 = vmatprep.subr.mxu0 0.0
    %779 = vmatpush2.msra.mxu0 0.0
    %780 = vmatprep.subr.mxu0 0.0
    %781 = vmatpush2.msra.mxu0 0.0
    %782 = vmatprep.subr.mxu0 0.0
    %783 = vmatpush2.msra.mxu0 0.0
    %784 = vmatprep.subr.mxu0 0.0
    %785 = vmatpush2.msra.mxu0 0.0
    %786 = vmatprep.subr.mxu0 0.0
    %787 = vmatpush2.msra.mxu0 0.0
    %788 = vmatprep.subr.mxu0 0.0
    %789 = vmatpush2.msra.mxu0 0.0
    %790 = vmatprep.subr.mxu0 0.0
    %791 = vmatpush2.msra.mxu0 0.0
    %792 = vmatprep.mubr.f32.mxu0 0.0
    %793 = vmatmul.mubr.f32.gmra.mxu0 %v726
    %v794 = vpop.f32.mrf.mxu0
    %v795 = vadd.f32 0.0, %v794
    %v796 = vpop.f32.mrf.mxu0
    %797 = vdwg.mxu0
    %v798 = vadd.f32 %v725, %v795
    %v799 = vxor.u32 %v798, 2147483648
    %v800 = vmul.f32 %v799, 1.442695
    %v801 = vpow.pop %v800
    %v802 = vadd.f32 %v801, 1.0
    %v803 = vrcp.pop %v802
    %v804 = vmul.f32 1.0, %v803
    %v805 = vtanh.pop %v798
    %v806 = vmul.f32 %v804, %v711
    %808 = vrot.lane.b32.xlu0 %v805, 64
    %v809 = vpop.permute.xlu0 %808
    %v811 = vmul.f32 %v804, %v809
    %813 = vrot.lane.b32.xlu0 %v811, 32
    %v814 = vpop.permute.xlu0 %813
    %v816 = vadd.f32 %v806, %v814
    %v817 = vtanh.pop %v816
    %819 = vrot.lane.b32.xlu0 %v817, 64
    %v820 = vpop.permute.xlu0 %819
    %v822 = vmul.f32 %v804, %v820
    %824 = vrot.lane.b32.xlu0 %v822, 32
    %v825 = vpop.permute.xlu0 %824
    %s827 = scalar_lea.vmem [#allocation2], 40
    %828 = vst.msk [vmem:[%s827] sm:$0xff] %vm58, %v825
    %s829 = scalar_lea.vmem [#allocation3], 48
    %v830 = vld [vmem:[%s829] sm:$0xff]
    %v831 = vsel %vm58, %v825, 0
    %833 = vmatprep.subr.mxu0 0.0
    %834 = vmatpush1.msra.mxu0 0.0
    %835 = vmatprep.subr.mxu0 0.0
    %836 = vmatpush1.msra.mxu0 0.0
    %837 = vmatprep.subr.mxu0 0.0
    %838 = vmatpush1.msra.mxu0 0.0
    %839 = vmatprep.subr.mxu0 0.0
    %840 = vmatpush1.msra.mxu0 0.0
    %841 = vmatprep.subr.mxu0 0.0
    %842 = vmatpush1.msra.mxu0 0.0
    %843 = vmatprep.subr.mxu0 0.0
    %844 = vmatpush1.msra.mxu0 0.0
    %845 = vmatprep.subr.mxu0 0.0
    %846 = vmatpush1.msra.mxu0 0.0
    %847 = vmatprep.subr.mxu0 0.0
    %848 = vmatpush1.msra.mxu0 0.0
    %849 = vmatprep.subr.mxu0 0.0
    %850 = vmatpush1.msra.mxu0 0.0
    %851 = vmatprep.subr.mxu0 0.0
    %852 = vmatpush1.msra.mxu0 0.0
    %853 = vmatprep.subr.mxu0 0.0
    %854 = vmatpush1.msra.mxu0 0.0
    %855 = vmatprep.subr.mxu0 0.0
    %856 = vmatpush1.msra.mxu0 0.0
    %857 = vmatprep.subr.mxu0 0.0
    %858 = vmatpush1.msra.mxu0 %v199
    %859 = vmatprep.subr.mxu0 0.0
    %860 = vmatpush1.msra.mxu0 %v198
    %861 = vmatprep.subr.mxu0 0.0
    %862 = vmatpush1.msra.mxu0 %v197
    %863 = vmatprep.subr.mxu0 0.0
    %864 = vmatpush1.msra.mxu0 %v196
    %865 = vmatprep.subr.mxu0 0.0
    %866 = vmatpush2.msra.mxu0 0.0
    %867 = vmatprep.subr.mxu0 0.0
    %868 = vmatpush2.msra.mxu0 0.0
    %869 = vmatprep.subr.mxu0 0.0
    %870 = vmatpush2.msra.mxu0 0.0
    %871 = vmatprep.subr.mxu0 0.0
    %872 = vmatpush2.msra.mxu0 0.0
    %873 = vmatprep.subr.mxu0 0.0
    %874 = vmatpush2.msra.mxu0 0.0
    %875 = vmatprep.subr.mxu0 0.0
    %876 = vmatpush2.msra.mxu0 0.0
    %877 = vmatprep.subr.mxu0 0.0
    %878 = vmatpush2.msra.mxu0 0.0
    %879 = vmatprep.subr.mxu0 0.0
    %880 = vmatpush2.msra.mxu0 0.0
    %881 = vmatprep.subr.mxu0 0.0
    %882 = vmatpush2.msra.mxu0 0.0
    %883 = vmatprep.subr.mxu0 0.0
    %884 = vmatpush2.msra.mxu0 0.0
    %885 = vmatprep.subr.mxu0 0.0
    %886 = vmatpush2.msra.mxu0 0.0
    %887 = vmatprep.subr.mxu0 0.0
    %888 = vmatpush2.msra.mxu0 0.0
    %889 = vmatprep.subr.mxu0 0.0
    %890 = vmatpush2.msra.mxu0 0.0
    %891 = vmatprep.subr.mxu0 0.0
    %892 = vmatpush2.msra.mxu0 0.0
    %893 = vmatprep.subr.mxu0 0.0
    %894 = vmatpush2.msra.mxu0 0.0
    %895 = vmatprep.subr.mxu0 0.0
    %896 = vmatpush2.msra.mxu0 0.0
    %897 = vmatprep.mubr.f32.mxu0 0.0
    %898 = vmatmul.mubr.f32.gmra.mxu0 %v831
    %v899 = vpop.f32.mrf.mxu0
    %v900 = vadd.f32 0.0, %v899
    %v901 = vpop.f32.mrf.mxu0
    %902 = vdwg.mxu0
    %v903 = vadd.f32 %v830, %v900
    %v904 = vxor.u32 %v903, 2147483648
    %v905 = vmul.f32 %v904, 1.442695
    %v906 = vpow.pop %v905
    %v907 = vadd.f32 %v906, 1.0
    %v908 = vrcp.pop %v907
    %v909 = vmul.f32 1.0, %v908
    %v910 = vtanh.pop %v903
    %v911 = vmul.f32 %v909, %v816
    %913 = vrot.lane.b32.xlu0 %v910, 64
    %v914 = vpop.permute.xlu0 %913
    %v916 = vmul.f32 %v909, %v914
    %918 = vrot.lane.b32.xlu0 %v916, 32
    %v919 = vpop.permute.xlu0 %918
    %v921 = vadd.f32 %v911, %v919
    %v922 = vtanh.pop %v921
    %924 = vrot.lane.b32.xlu0 %v922, 64
    %v925 = vpop.permute.xlu0 %924
    %v927 = vmul.f32 %v909, %v925
    %929 = vrot.lane.b32.xlu0 %v927, 32
    %v930 = vpop.permute.xlu0 %929
    %s932 = scalar_lea.vmem [#allocation2], 48
    %933 = vst.msk [vmem:[%s932] sm:$0xff] %vm58, %v930
    %s934 = scalar_lea.vmem [#allocation3], 56
    %v935 = vld [vmem:[%s934] sm:$0xff]
    %v936 = vsel %vm58, %v930, 0
    %938 = vmatprep.subr.mxu0 0.0
    %939 = vmatpush1.msra.mxu0 0.0
    %940 = vmatprep.subr.mxu0 0.0
    %941 = vmatpush1.msra.mxu0 0.0
    %942 = vmatprep.subr.mxu0 0.0
    %943 = vmatpush1.msra.mxu0 0.0
    %944 = vmatprep.subr.mxu0 0.0
    %945 = vmatpush1.msra.mxu0 0.0
    %946 = vmatprep.subr.mxu0 0.0
    %947 = vmatpush1.msra.mxu0 0.0
    %948 = vmatprep.subr.mxu0 0.0
    %949 = vmatpush1.msra.mxu0 0.0
    %950 = vmatprep.subr.mxu0 0.0
    %951 = vmatpush1.msra.mxu0 0.0
    %952 = vmatprep.subr.mxu0 0.0
    %953 = vmatpush1.msra.mxu0 0.0
    %954 = vmatprep.subr.mxu0 0.0
    %955 = vmatpush1.msra.mxu0 0.0
    %956 = vmatprep.subr.mxu0 0.0
    %957 = vmatpush1.msra.mxu0 0.0
    %958 = vmatprep.subr.mxu0 0.0
    %959 = vmatpush1.msra.mxu0 0.0
    %960 = vmatprep.subr.mxu0 0.0
    %961 = vmatpush1.msra.mxu0 0.0
    %962 = vmatprep.subr.mxu0 0.0
    %963 = vmatpush1.msra.mxu0 %v199
    %964 = vmatprep.subr.mxu0 0.0
    %965 = vmatpush1.msra.mxu0 %v198
    %966 = vmatprep.subr.mxu0 0.0
    %967 = vmatpush1.msra.mxu0 %v197
    %968 = vmatprep.subr.mxu0 0.0
    %969 = vmatpush1.msra.mxu0 %v196
    %970 = vmatprep.subr.mxu0 0.0
    %971 = vmatpush2.msra.mxu0 0.0
    %972 = vmatprep.subr.mxu0 0.0
    %973 = vmatpush2.msra.mxu0 0.0
    %974 = vmatprep.subr.mxu0 0.0
    %975 = vmatpush2.msra.mxu0 0.0
    %976 = vmatprep.subr.mxu0 0.0
    %977 = vmatpush2.msra.mxu0 0.0
    %978 = vmatprep.subr.mxu0 0.0
    %979 = vmatpush2.msra.mxu0 0.0
    %980 = vmatprep.subr.mxu0 0.0
    %981 = vmatpush2.msra.mxu0 0.0
    %982 = vmatprep.subr.mxu0 0.0
    %983 = vmatpush2.msra.mxu0 0.0
    %984 = vmatprep.subr.mxu0 0.0
    %985 = vmatpush2.msra.mxu0 0.0
    %986 = vmatprep.subr.mxu0 0.0
    %987 = vmatpush2.msra.mxu0 0.0
    %988 = vmatprep.subr.mxu0 0.0
    %989 = vmatpush2.msra.mxu0 0.0
    %990 = vmatprep.subr.mxu0 0.0
    %991 = vmatpush2.msra.mxu0 0.0
    %992 = vmatprep.subr.mxu0 0.0
    %993 = vmatpush2.msra.mxu0 0.0
    %994 = vmatprep.subr.mxu0 0.0
    %995 = vmatpush2.msra.mxu0 0.0
    %996 = vmatprep.subr.mxu0 0.0
    %997 = vmatpush2.msra.mxu0 0.0
    %998 = vmatprep.subr.mxu0 0.0
    %999 = vmatpush2.msra.mxu0 0.0
    %1000 = vmatprep.subr.mxu0 0.0
    %1001 = vmatpush2.msra.mxu0 0.0
    %1002 = vmatprep.mubr.f32.mxu0 0.0
    %1003 = vmatmul.mubr.f32.gmra.mxu0 %v936
    %v1004 = vpop.f32.mrf.mxu0
    %v1005 = vadd.f32 0.0, %v1004
    %v1006 = vpop.f32.mrf.mxu0
    %1007 = vdwg.mxu0
    %v1008 = vadd.f32 %v935, %v1005
    %v1009 = vxor.u32 %v1008, 2147483648
    %v1010 = vmul.f32 %v1009, 1.442695
    %v1011 = vpow.pop %v1010
    %v1012 = vadd.f32 %v1011, 1.0
    %v1013 = vrcp.pop %v1012
    %v1014 = vmul.f32 1.0, %v1013
    %v1015 = vtanh.pop %v1008
    %v1016 = vmul.f32 %v1014, %v921
    %1018 = vrot.lane.b32.xlu0 %v1015, 64
    %v1019 = vpop.permute.xlu0 %1018
    %v1021 = vmul.f32 %v1014, %v1019
    %1023 = vrot.lane.b32.xlu0 %v1021, 32
    %v1024 = vpop.permute.xlu0 %1023
    %v1026 = vadd.f32 %v1016, %v1024
    %v1027 = vtanh.pop %v1026
    %1029 = vrot.lane.b32.xlu0 %v1027, 64
    %v1030 = vpop.permute.xlu0 %1029
    %v1032 = vmul.f32 %v1014, %v1030
    %1034 = vrot.lane.b32.xlu0 %v1032, 32
    %v1035 = vpop.permute.xlu0 %1034
    %s1037 = scalar_lea.vmem [#allocation2], 56
    %1038 = vst.msk [vmem:[%s1037] sm:$0xff] %vm58, %v1035
    %v1039 = vld [vmem:[#allocation2] sm:$0xff]
    %v1040 = vld [vmem:[#allocation2 + $0x8] sm:$0xff]
    %v1041 = vld [vmem:[#allocation2 + $0x10] sm:$0xff]
    %v1042 = vld [vmem:[#allocation2 + $0x18] sm:$0xff]
    %v1043 = vld [vmem:[#allocation2 + $0x20] sm:$0xff]
    %v1044 = vld [vmem:[#allocation2 + $0x28] sm:$0xff]
    %v1045 = vld [vmem:[#allocation2 + $0x30] sm:$0xff]
    %v1046 = vld [vmem:[#allocation2 + $0x38] sm:$0xff]
    %v1047 = vld [vmem:[%s4] sm:$0xff]
    %v1048 = vld [vmem:[%s4 + $0x8] sm:$0xff]
    %v1049 = vld [vmem:[%s4 + $0x10] sm:$0xff]
    %v1050 = vld [vmem:[%s4 + $0x18] sm:$0xff]
    %v1051 = vld [vmem:[%s6] sm:$0x1]
    %v1053 = vlaneseq
    %v1054 = vshrl.u32 %v1053, 7
    %v1055 = vsub.s32 0, %v1054
    %v1056 = vrot.slane %v1051, %v1055
    %v1059 = vsel %vm58, %v1039, 0
    %v1062 = vsel %vm58, %v1040, 0
    %v1065 = vsel %vm58, %v1041, 0
    %v1068 = vsel %vm58, %v1042, 0
    %v1071 = vsel %vm58, %v1043, 0
    %v1074 = vsel %vm58, %v1044, 0
    %v1077 = vsel %vm58, %v1045, 0
    %v1080 = vsel %vm58, %v1046, 0
    %1082 = vmatprep.subr.mxu0 0.0
    %1083 = vmatpush1.msra.mxu0 0.0
    %1084 = vmatprep.subr.mxu0 0.0
    %1085 = vmatpush1.msra.mxu0 0.0
    %1086 = vmatprep.subr.mxu0 0.0
    %1087 = vmatpush1.msra.mxu0 0.0
    %1088 = vmatprep.subr.mxu0 0.0
    %1089 = vmatpush1.msra.mxu0 0.0
    %1090 = vmatprep.subr.mxu0 0.0
    %1091 = vmatpush1.msra.mxu0 0.0
    %1092 = vmatprep.subr.mxu0 0.0
    %1093 = vmatpush1.msra.mxu0 0.0
    %1094 = vmatprep.subr.mxu0 0.0
    %1095 = vmatpush1.msra.mxu0 0.0
    %1096 = vmatprep.subr.mxu0 0.0
    %1097 = vmatpush1.msra.mxu0 0.0
    %1098 = vmatprep.subr.mxu0 0.0
    %1099 = vmatpush1.msra.mxu0 0.0
    %1100 = vmatprep.subr.mxu0 0.0
    %1101 = vmatpush1.msra.mxu0 0.0
    %1102 = vmatprep.subr.mxu0 0.0
    %1103 = vmatpush1.msra.mxu0 0.0
    %1104 = vmatprep.subr.mxu0 0.0
    %1105 = vmatpush1.msra.mxu0 0.0
    %1106 = vmatprep.subr.mxu0 0.0
    %1107 = vmatpush1.msra.mxu0 %v1050
    %1108 = vmatprep.subr.mxu0 0.0
    %1109 = vmatpush1.msra.mxu0 %v1049
    %1110 = vmatprep.subr.mxu0 0.0
    %1111 = vmatpush1.msra.mxu0 %v1048
    %1112 = vmatprep.subr.mxu0 0.0
    %1113 = vmatpush1.msra.mxu0 %v1047
    %1114 = vmatprep.subr.mxu0 0.0
    %1115 = vmatpush2.msra.mxu0 0.0
    %1116 = vmatprep.subr.mxu0 0.0
    %1117 = vmatpush2.msra.mxu0 0.0
    %1118 = vmatprep.subr.mxu0 0.0
    %1119 = vmatpush2.msra.mxu0 0.0
    %1120 = vmatprep.subr.mxu0 0.0
    %1121 = vmatpush2.msra.mxu0 0.0
    %1122 = vmatprep.subr.mxu0 0.0
    %1123 = vmatpush2.msra.mxu0 0.0
    %1124 = vmatprep.subr.mxu0 0.0
    %1125 = vmatpush2.msra.mxu0 0.0
    %1126 = vmatprep.subr.mxu0 0.0
    %1127 = vmatpush2.msra.mxu0 0.0
    %1128 = vmatprep.subr.mxu0 0.0
    %1129 = vmatpush2.msra.mxu0 0.0
    %1130 = vmatprep.subr.mxu0 0.0
    %1131 = vmatpush2.msra.mxu0 0.0
    %1132 = vmatprep.subr.mxu0 0.0
    %1133 = vmatpush2.msra.mxu0 0.0
    %1134 = vmatprep.subr.mxu0 0.0
    %1135 = vmatpush2.msra.mxu0 0.0
    %1136 = vmatprep.subr.mxu0 0.0
    %1137 = vmatpush2.msra.mxu0 0.0
    %1138 = vmatprep.subr.mxu0 0.0
    %1139 = vmatpush2.msra.mxu0 0.0
    %1140 = vmatprep.subr.mxu0 0.0
    %1141 = vmatpush2.msra.mxu0 0.0
    %1142 = vmatprep.subr.mxu0 0.0
    %1143 = vmatpush2.msra.mxu0 0.0
    %1144 = vmatprep.subr.mxu0 0.0
    %1145 = vmatpush2.msra.mxu0 0.0
    %1146 = vmatprep.mubr.f32.mxu0 0.0
    %1147 = vmatmul.mubr.f32.gmra.mxu0 %v1059
    %v1148 = vpop.f32.mrf.mxu0
    %v1149 = vadd.f32 %v1056, %v1148
    %v1150 = vpop.f32.mrf.mxu0
    %1151 = vmatprep.mubr.f32.mxu0 0.0
    %1152 = vmatmul.mubr.f32.gmra.mxu0 %v1062
    %v1153 = vpop.f32.mrf.mxu0
    %v1154 = vadd.f32 %v1056, %v1153
    %v1155 = vpop.f32.mrf.mxu0
    %1156 = vmatprep.mubr.f32.mxu0 0.0
    %1157 = vmatmul.mubr.f32.gmra.mxu0 %v1065
    %v1158 = vpop.f32.mrf.mxu0
    %v1159 = vadd.f32 %v1056, %v1158
    %v1160 = vpop.f32.mrf.mxu0
    %1161 = vmatprep.mubr.f32.mxu0 0.0
    %1162 = vmatmul.mubr.f32.gmra.mxu0 %v1068
    %v1163 = vpop.f32.mrf.mxu0
    %v1164 = vadd.f32 %v1056, %v1163
    %v1165 = vpop.f32.mrf.mxu0
    %1166 = vmatprep.mubr.f32.mxu0 0.0
    %1167 = vmatmul.mubr.f32.gmra.mxu0 %v1071
    %v1168 = vpop.f32.mrf.mxu0
    %v1169 = vadd.f32 %v1056, %v1168
    %v1170 = vpop.f32.mrf.mxu0
    %1171 = vmatprep.mubr.f32.mxu0 0.0
    %1172 = vmatmul.mubr.f32.gmra.mxu0 %v1074
    %v1173 = vpop.f32.mrf.mxu0
    %v1174 = vadd.f32 %v1056, %v1173
    %v1175 = vpop.f32.mrf.mxu0
    %1176 = vmatprep.mubr.f32.mxu0 0.0
    %1177 = vmatmul.mubr.f32.gmra.mxu0 %v1077
    %v1178 = vpop.f32.mrf.mxu0
    %v1179 = vadd.f32 %v1056, %v1178
    %v1180 = vpop.f32.mrf.mxu0
    %1181 = vmatprep.mubr.f32.mxu0 0.0
    %1182 = vmatmul.mubr.f32.gmra.mxu0 %v1080
    %v1183 = vpop.f32.mrf.mxu0
    %v1184 = vadd.f32 %v1056, %v1183
    %v1185 = vpop.f32.mrf.mxu0
    %1186 = vdwg.mxu0
    %1187 = vst [vmem:[#allocation3] sm:$0xff] %v1149
    %1188 = vst [vmem:[#allocation3 + $0x8] sm:$0xff] %v1154
    %1189 = vst [vmem:[#allocation3 + $0x10] sm:$0xff] %v1159
    %1190 = vst [vmem:[#allocation3 + $0x18] sm:$0xff] %v1164
    %1191 = vst [vmem:[#allocation3 + $0x20] sm:$0xff] %v1169
    %1192 = vst [vmem:[#allocation3 + $0x28] sm:$0xff] %v1174
    %1193 = vst [vmem:[#allocation3 + $0x30] sm:$0xff] %v1179
    %1194 = vst [vmem:[#allocation3 + $0x38] sm:$0xff] %v1184
    %v1195 = vld [vmem:[%s5] sm:$0xff]
    %v1196 = vld [vmem:[%s5 + $0x8] sm:$0xff]
    %v1197 = vld [vmem:[%s5 + $0x10] sm:$0xff]
    %v1198 = vld [vmem:[%s5 + $0x18] sm:$0xff]
    %v1199 = vld [vmem:[#allocation3] sm:$0xff]
    %1200 = vmatprep.subr.mxu0 0.0
    %1201 = vmatpush1.msra.mxu0 0.0
    %1202 = vmatprep.subr.mxu0 0.0
    %1203 = vmatpush1.msra.mxu0 0.0
    %1204 = vmatprep.subr.mxu0 0.0
    %1205 = vmatpush1.msra.mxu0 0.0
    %1206 = vmatprep.subr.mxu0 0.0
    %1207 = vmatpush1.msra.mxu0 0.0
    %1208 = vmatprep.subr.mxu0 0.0
    %1209 = vmatpush1.msra.mxu0 0.0
    %1210 = vmatprep.subr.mxu0 0.0
    %1211 = vmatpush1.msra.mxu0 0.0
    %1212 = vmatprep.subr.mxu0 0.0
    %1213 = vmatpush1.msra.mxu0 0.0
    %1214 = vmatprep.subr.mxu0 0.0
    %1215 = vmatpush1.msra.mxu0 0.0
    %1216 = vmatprep.subr.mxu0 0.0
    %1217 = vmatpush1.msra.mxu0 0.0
    %1218 = vmatprep.subr.mxu0 0.0
    %1219 = vmatpush1.msra.mxu0 0.0
    %1220 = vmatprep.subr.mxu0 0.0
    %1221 = vmatpush1.msra.mxu0 0.0
    %1222 = vmatprep.subr.mxu0 0.0
    %1223 = vmatpush1.msra.mxu0 0.0
    %1224 = vmatprep.subr.mxu0 0.0
    %1225 = vmatpush1.msra.mxu0 %v1198
    %1226 = vmatprep.subr.mxu0 0.0
    %1227 = vmatpush1.msra.mxu0 %v1197
    %1228 = vmatprep.subr.mxu0 0.0
    %1229 = vmatpush1.msra.mxu0 %v1196
    %1230 = vmatprep.subr.mxu0 0.0
    %1231 = vmatpush1.msra.mxu0 %v1195
    %1232 = vmatprep.subr.mxu0 0.0
    %1233 = vmatpush2.msra.mxu0 0.0
    %1234 = vmatprep.subr.mxu0 0.0
    %1235 = vmatpush2.msra.mxu0 0.0
    %1236 = vmatprep.subr.mxu0 0.0
    %1237 = vmatpush2.msra.mxu0 0.0
    %1238 = vmatprep.subr.mxu0 0.0
    %1239 = vmatpush2.msra.mxu0 0.0
    %1240 = vmatprep.subr.mxu0 0.0
    %1241 = vmatpush2.msra.mxu0 0.0
    %1242 = vmatprep.subr.mxu0 0.0
    %1243 = vmatpush2.msra.mxu0 0.0
    %1244 = vmatprep.subr.mxu0 0.0
    %1245 = vmatpush2.msra.mxu0 0.0
    %1246 = vmatprep.subr.mxu0 0.0
    %1247 = vmatpush2.msra.mxu0 0.0
    %1248 = vmatprep.subr.mxu0 0.0
    %1249 = vmatpush2.msra.mxu0 0.0
    %1250 = vmatprep.subr.mxu0 0.0
    %1251 = vmatpush2.msra.mxu0 0.0
    %1252 = vmatprep.subr.mxu0 0.0
    %1253 = vmatpush2.msra.mxu0 0.0
    %1254 = vmatprep.subr.mxu0 0.0
    %1255 = vmatpush2.msra.mxu0 0.0
    %1256 = vmatprep.subr.mxu0 0.0
    %1257 = vmatpush2.msra.mxu0 0.0
    %1258 = vmatprep.subr.mxu0 0.0
    %1259 = vmatpush2.msra.mxu0 0.0
    %1260 = vmatprep.subr.mxu0 0.0
    %1261 = vmatpush2.msra.mxu0 0.0
    %1262 = vmatprep.subr.mxu0 0.0
    %1263 = vmatpush2.msra.mxu0 0.0
    %1264 = vmatprep.mubr.f32.mxu0 0.0
    %1265 = vmatmul.mubr.f32.gmra.mxu0 %v202
    %v1266 = vpop.f32.mrf.mxu0
    %v1267 = vadd.f32 0.0, %v1266
    %v1268 = vpop.f32.mrf.mxu0
    %1269 = vdwg.mxu0
    %v1270 = vadd.f32 %v1199, %v1267
    %v1271 = vxor.u32 %v1270, 2147483648
    %v1272 = vmul.f32 %v1271, 1.442695
    %v1273 = vpow.pop %v1272
    %v1274 = vadd.f32 %v1273, 1.0
    %v1275 = vrcp.pop %v1274
    %v1276 = vmul.f32 1.0, %v1275
    %v1277 = vtanh.pop %v1270
    %v1278 = vmul.f32 %v1276, 0.0
    %1280 = vrot.lane.b32.xlu0 %v1277, 64
    %v1281 = vpop.permute.xlu0 %1280
    %v1283 = vmul.f32 %v1276, %v1281
    %1285 = vrot.lane.b32.xlu0 %v1283, 32
    %v1286 = vpop.permute.xlu0 %1285
    %v1288 = vadd.f32 %v1278, %v1286
    %v1289 = vtanh.pop %v1288
    %1291 = vrot.lane.b32.xlu0 %v1289, 64
    %v1292 = vpop.permute.xlu0 %1291
    %v1294 = vmul.f32 %v1276, %v1292
    %v1295 = vld [vmem:[%s304] sm:$0xff]
    %1297 = vrot.lane.b32.xlu0 %v1294, 32
    %v1298 = vpop.permute.xlu0 %1297
    %v1299 = vsel %vm58, %v1298, 0
    %1301 = vmatprep.subr.mxu0 0.0
    %1302 = vmatpush1.msra.mxu0 0.0
    %1303 = vmatprep.subr.mxu0 0.0
    %1304 = vmatpush1.msra.mxu0 0.0
    %1305 = vmatprep.subr.mxu0 0.0
    %1306 = vmatpush1.msra.mxu0 0.0
    %1307 = vmatprep.subr.mxu0 0.0
    %1308 = vmatpush1.msra.mxu0 0.0
    %1309 = vmatprep.subr.mxu0 0.0
    %1310 = vmatpush1.msra.mxu0 0.0
    %1311 = vmatprep.subr.mxu0 0.0
    %1312 = vmatpush1.msra.mxu0 0.0
    %1313 = vmatprep.subr.mxu0 0.0
    %1314 = vmatpush1.msra.mxu0 0.0
    %1315 = vmatprep.subr.mxu0 0.0
    %1316 = vmatpush1.msra.mxu0 0.0
    %1317 = vmatprep.subr.mxu0 0.0
    %1318 = vmatpush1.msra.mxu0 0.0
    %1319 = vmatprep.subr.mxu0 0.0
    %1320 = vmatpush1.msra.mxu0 0.0
    %1321 = vmatprep.subr.mxu0 0.0
    %1322 = vmatpush1.msra.mxu0 0.0
    %1323 = vmatprep.subr.mxu0 0.0
    %1324 = vmatpush1.msra.mxu0 0.0
    %1325 = vmatprep.subr.mxu0 0.0
    %1326 = vmatpush1.msra.mxu0 %v1198
    %1327 = vmatprep.subr.mxu0 0.0
    %1328 = vmatpush1.msra.mxu0 %v1197
    %1329 = vmatprep.subr.mxu0 0.0
    %1330 = vmatpush1.msra.mxu0 %v1196
    %1331 = vmatprep.subr.mxu0 0.0
    %1332 = vmatpush1.msra.mxu0 %v1195
    %1333 = vmatprep.subr.mxu0 0.0
    %1334 = vmatpush2.msra.mxu0 0.0
    %1335 = vmatprep.subr.mxu0 0.0
    %1336 = vmatpush2.msra.mxu0 0.0
    %1337 = vmatprep.subr.mxu0 0.0
    %1338 = vmatpush2.msra.mxu0 0.0
    %1339 = vmatprep.subr.mxu0 0.0
    %1340 = vmatpush2.msra.mxu0 0.0
    %1341 = vmatprep.subr.mxu0 0.0
    %1342 = vmatpush2.msra.mxu0 0.0
    %1343 = vmatprep.subr.mxu0 0.0
    %1344 = vmatpush2.msra.mxu0 0.0
    %1345 = vmatprep.subr.mxu0 0.0
    %1346 = vmatpush2.msra.mxu0 0.0
    %1347 = vmatprep.subr.mxu0 0.0
    %1348 = vmatpush2.msra.mxu0 0.0
    %1349 = vmatprep.subr.mxu0 0.0
    %1350 = vmatpush2.msra.mxu0 0.0
    %1351 = vmatprep.subr.mxu0 0.0
    %1352 = vmatpush2.msra.mxu0 0.0
    %1353 = vmatprep.subr.mxu0 0.0
    %1354 = vmatpush2.msra.mxu0 0.0
    %1355 = vmatprep.subr.mxu0 0.0
    %1356 = vmatpush2.msra.mxu0 0.0
    %1357 = vmatprep.subr.mxu0 0.0
    %1358 = vmatpush2.msra.mxu0 0.0
    %1359 = vmatprep.subr.mxu0 0.0
    %1360 = vmatpush2.msra.mxu0 0.0
    %1361 = vmatprep.subr.mxu0 0.0
    %1362 = vmatpush2.msra.mxu0 0.0
    %1363 = vmatprep.subr.mxu0 0.0
    %1364 = vmatpush2.msra.mxu0 0.0
    %1365 = vmatprep.mubr.f32.mxu0 0.0
    %1366 = vmatmul.mubr.f32.gmra.mxu0 %v1299
    %v1367 = vpop.f32.mrf.mxu0
    %v1368 = vadd.f32 0.0, %v1367
    %v1369 = vpop.f32.mrf.mxu0
    %1370 = vdwg.mxu0
    %v1371 = vadd.f32 %v1295, %v1368
    %v1372 = vxor.u32 %v1371, 2147483648
    %v1373 = vmul.f32 %v1372, 1.442695
    %v1374 = vpow.pop %v1373
    %v1375 = vadd.f32 %v1374, 1.0
    %v1376 = vrcp.pop %v1375
    %v1377 = vmul.f32 1.0, %v1376
    %v1378 = vtanh.pop %v1371
    %v1379 = vmul.f32 %v1377, %v1288
    %1381 = vrot.lane.b32.xlu0 %v1378, 64
    %v1382 = vpop.permute.xlu0 %1381
    %v1384 = vmul.f32 %v1377, %v1382
    %1386 = vrot.lane.b32.xlu0 %v1384, 32
    %v1387 = vpop.permute.xlu0 %1386
    %v1389 = vadd.f32 %v1379, %v1387
    %v1390 = vtanh.pop %v1389
    %1392 = vrot.lane.b32.xlu0 %v1390, 64
    %v1393 = vpop.permute.xlu0 %1392
    %v1395 = vmul.f32 %v1377, %v1393
    %v1396 = vld [vmem:[%s409] sm:$0xff]
    %1398 = vrot.lane.b32.xlu0 %v1395, 32
    %v1399 = vpop.permute.xlu0 %1398
    %v1400 = vsel %vm58, %v1399, 0
    %1402 = vmatprep.subr.mxu0 0.0
    %1403 = vmatpush1.msra.mxu0 0.0
    %1404 = vmatprep.subr.mxu0 0.0
    %1405 = vmatpush1.msra.mxu0 0.0
    %1406 = vmatprep.subr.mxu0 0.0
    %1407 = vmatpush1.msra.mxu0 0.0
    %1408 = vmatprep.subr.mxu0 0.0
    %1409 = vmatpush1.msra.mxu0 0.0
    %1410 = vmatprep.subr.mxu0 0.0
    %1411 = vmatpush1.msra.mxu0 0.0
    %1412 = vmatprep.subr.mxu0 0.0
    %1413 = vmatpush1.msra.mxu0 0.0
    %1414 = vmatprep.subr.mxu0 0.0
    %1415 = vmatpush1.msra.mxu0 0.0
    %1416 = vmatprep.subr.mxu0 0.0
    %1417 = vmatpush1.msra.mxu0 0.0
    %1418 = vmatprep.subr.mxu0 0.0
    %1419 = vmatpush1.msra.mxu0 0.0
    %1420 = vmatprep.subr.mxu0 0.0
    %1421 = vmatpush1.msra.mxu0 0.0
    %1422 = vmatprep.subr.mxu0 0.0
    %1423 = vmatpush1.msra.mxu0 0.0
    %1424 = vmatprep.subr.mxu0 0.0
    %1425 = vmatpush1.msra.mxu0 0.0
    %1426 = vmatprep.subr.mxu0 0.0
    %1427 = vmatpush1.msra.mxu0 %v1198
    %1428 = vmatprep.subr.mxu0 0.0
    %1429 = vmatpush1.msra.mxu0 %v1197
    %1430 = vmatprep.subr.mxu0 0.0
    %1431 = vmatpush1.msra.mxu0 %v1196
    %1432 = vmatprep.subr.mxu0 0.0
    %1433 = vmatpush1.msra.mxu0 %v1195
    %1434 = vmatprep.subr.mxu0 0.0
    %1435 = vmatpush2.msra.mxu0 0.0
    %1436 = vmatprep.subr.mxu0 0.0
    %1437 = vmatpush2.msra.mxu0 0.0
    %1438 = vmatprep.subr.mxu0 0.0
    %1439 = vmatpush2.msra.mxu0 0.0
    %1440 = vmatprep.subr.mxu0 0.0
    %1441 = vmatpush2.msra.mxu0 0.0
    %1442 = vmatprep.subr.mxu0 0.0
    %1443 = vmatpush2.msra.mxu0 0.0
    %1444 = vmatprep.subr.mxu0 0.0
    %1445 = vmatpush2.msra.mxu0 0.0
    %1446 = vmatprep.subr.mxu0 0.0
    %1447 = vmatpush2.msra.mxu0 0.0
    %1448 = vmatprep.subr.mxu0 0.0
    %1449 = vmatpush2.msra.mxu0 0.0
    %1450 = vmatprep.subr.mxu0 0.0
    %1451 = vmatpush2.msra.mxu0 0.0
    %1452 = vmatprep.subr.mxu0 0.0
    %1453 = vmatpush2.msra.mxu0 0.0
    %1454 = vmatprep.subr.mxu0 0.0
    %1455 = vmatpush2.msra.mxu0 0.0
    %1456 = vmatprep.subr.mxu0 0.0
    %1457 = vmatpush2.msra.mxu0 0.0
    %1458 = vmatprep.subr.mxu0 0.0
    %1459 = vmatpush2.msra.mxu0 0.0
    %1460 = vmatprep.subr.mxu0 0.0
    %1461 = vmatpush2.msra.mxu0 0.0
    %1462 = vmatprep.subr.mxu0 0.0
    %1463 = vmatpush2.msra.mxu0 0.0
    %1464 = vmatprep.subr.mxu0 0.0
    %1465 = vmatpush2.msra.mxu0 0.0
    %1466 = vmatprep.mubr.f32.mxu0 0.0
    %1467 = vmatmul.mubr.f32.gmra.mxu0 %v1400
    %v1468 = vpop.f32.mrf.mxu0
    %v1469 = vadd.f32 0.0, %v1468
    %v1470 = vpop.f32.mrf.mxu0
    %1471 = vdwg.mxu0
    %v1472 = vadd.f32 %v1396, %v1469
    %v1473 = vxor.u32 %v1472, 2147483648
    %v1474 = vmul.f32 %v1473, 1.442695
    %v1475 = vpow.pop %v1474
    %v1476 = vadd.f32 %v1475, 1.0
    %v1477 = vrcp.pop %v1476
    %v1478 = vmul.f32 1.0, %v1477
    %v1479 = vtanh.pop %v1472
    %v1480 = vmul.f32 %v1478, %v1389
    %1482 = vrot.lane.b32.xlu0 %v1479, 64
    %v1483 = vpop.permute.xlu0 %1482
    %v1485 = vmul.f32 %v1478, %v1483
    %1487 = vrot.lane.b32.xlu0 %v1485, 32
    %v1488 = vpop.permute.xlu0 %1487
    %v1490 = vadd.f32 %v1480, %v1488
    %v1491 = vtanh.pop %v1490
    %1493 = vrot.lane.b32.xlu0 %v1491, 64
    %v1494 = vpop.permute.xlu0 %1493
    %v1496 = vmul.f32 %v1478, %v1494
    %v1497 = vld [vmem:[%s514] sm:$0xff]
    %1499 = vrot.lane.b32.xlu0 %v1496, 32
    %v1500 = vpop.permute.xlu0 %1499
    %v1501 = vsel %vm58, %v1500, 0
    %1503 = vmatprep.subr.mxu0 0.0
    %1504 = vmatpush1.msra.mxu0 0.0
    %1505 = vmatprep.subr.mxu0 0.0
    %1506 = vmatpush1.msra.mxu0 0.0
    %1507 = vmatprep.subr.mxu0 0.0
    %1508 = vmatpush1.msra.mxu0 0.0
    %1509 = vmatprep.subr.mxu0 0.0
    %1510 = vmatpush1.msra.mxu0 0.0
    %1511 = vmatprep.subr.mxu0 0.0
    %1512 = vmatpush1.msra.mxu0 0.0
    %1513 = vmatprep.subr.mxu0 0.0
    %1514 = vmatpush1.msra.mxu0 0.0
    %1515 = vmatprep.subr.mxu0 0.0
    %1516 = vmatpush1.msra.mxu0 0.0
    %1517 = vmatprep.subr.mxu0 0.0
    %1518 = vmatpush1.msra.mxu0 0.0
    %1519 = vmatprep.subr.mxu0 0.0
    %1520 = vmatpush1.msra.mxu0 0.0
    %1521 = vmatprep.subr.mxu0 0.0
    %1522 = vmatpush1.msra.mxu0 0.0
    %1523 = vmatprep.subr.mxu0 0.0
    %1524 = vmatpush1.msra.mxu0 0.0
    %1525 = vmatprep.subr.mxu0 0.0
    %1526 = vmatpush1.msra.mxu0 0.0
    %1527 = vmatprep.subr.mxu0 0.0
    %1528 = vmatpush1.msra.mxu0 %v1198
    %1529 = vmatprep.subr.mxu0 0.0
    %1530 = vmatpush1.msra.mxu0 %v1197
    %1531 = vmatprep.subr.mxu0 0.0
    %1532 = vmatpush1.msra.mxu0 %v1196
    %1533 = vmatprep.subr.mxu0 0.0
    %1534 = vmatpush1.msra.mxu0 %v1195
    %1535 = vmatprep.subr.mxu0 0.0
    %1536 = vmatpush2.msra.mxu0 0.0
    %1537 = vmatprep.subr.mxu0 0.0
    %1538 = vmatpush2.msra.mxu0 0.0
    %1539 = vmatprep.subr.mxu0 0.0
    %1540 = vmatpush2.msra.mxu0 0.0
    %1541 = vmatprep.subr.mxu0 0.0
    %1542 = vmatpush2.msra.mxu0 0.0
    %1543 = vmatprep.subr.mxu0 0.0
    %1544 = vmatpush2.msra.mxu0 0.0
    %1545 = vmatprep.subr.mxu0 0.0
    %1546 = vmatpush2.msra.mxu0 0.0
    %1547 = vmatprep.subr.mxu0 0.0
    %1548 = vmatpush2.msra.mxu0 0.0
    %1549 = vmatprep.subr.mxu0 0.0
    %1550 = vmatpush2.msra.mxu0 0.0
    %1551 = vmatprep.subr.mxu0 0.0
    %1552 = vmatpush2.msra.mxu0 0.0
    %1553 = vmatprep.subr.mxu0 0.0
    %1554 = vmatpush2.msra.mxu0 0.0
    %1555 = vmatprep.subr.mxu0 0.0
    %1556 = vmatpush2.msra.mxu0 0.0
    %1557 = vmatprep.subr.mxu0 0.0
    %1558 = vmatpush2.msra.mxu0 0.0
    %1559 = vmatprep.subr.mxu0 0.0
    %1560 = vmatpush2.msra.mxu0 0.0
    %1561 = vmatprep.subr.mxu0 0.0
    %1562 = vmatpush2.msra.mxu0 0.0
    %1563 = vmatprep.subr.mxu0 0.0
    %1564 = vmatpush2.msra.mxu0 0.0
    %1565 = vmatprep.subr.mxu0 0.0
    %1566 = vmatpush2.msra.mxu0 0.0
    %1567 = vmatprep.mubr.f32.mxu0 0.0
    %1568 = vmatmul.mubr.f32.gmra.mxu0 %v1501
    %v1569 = vpop.f32.mrf.mxu0
    %v1570 = vadd.f32 0.0, %v1569
    %v1571 = vpop.f32.mrf.mxu0
    %1572 = vdwg.mxu0
    %v1573 = vadd.f32 %v1497, %v1570
    %v1574 = vxor.u32 %v1573, 2147483648
    %v1575 = vmul.f32 %v1574, 1.442695
    %v1576 = vpow.pop %v1575
    %v1577 = vadd.f32 %v1576, 1.0
    %v1578 = vrcp.pop %v1577
    %v1579 = vmul.f32 1.0, %v1578
    %v1580 = vtanh.pop %v1573
    %v1581 = vmul.f32 %v1579, %v1490
    %1583 = vrot.lane.b32.xlu0 %v1580, 64
    %v1584 = vpop.permute.xlu0 %1583
    %v1586 = vmul.f32 %v1579, %v1584
    %1588 = vrot.lane.b32.xlu0 %v1586, 32
    %v1589 = vpop.permute.xlu0 %1588
    %v1591 = vadd.f32 %v1581, %v1589
    %v1592 = vtanh.pop %v1591
    %1594 = vrot.lane.b32.xlu0 %v1592, 64
    %v1595 = vpop.permute.xlu0 %1594
    %v1597 = vmul.f32 %v1579, %v1595
    %v1598 = vld [vmem:[%s619] sm:$0xff]
    %1600 = vrot.lane.b32.xlu0 %v1597, 32
    %v1601 = vpop.permute.xlu0 %1600
    %v1602 = vsel %vm58, %v1601, 0
    %1604 = vmatprep.subr.mxu0 0.0
    %1605 = vmatpush1.msra.mxu0 0.0
    %1606 = vmatprep.subr.mxu0 0.0
    %1607 = vmatpush1.msra.mxu0 0.0
    %1608 = vmatprep.subr.mxu0 0.0
    %1609 = vmatpush1.msra.mxu0 0.0
    %1610 = vmatprep.subr.mxu0 0.0
    %1611 = vmatpush1.msra.mxu0 0.0
    %1612 = vmatprep.subr.mxu0 0.0
    %1613 = vmatpush1.msra.mxu0 0.0
    %1614 = vmatprep.subr.mxu0 0.0
    %1615 = vmatpush1.msra.mxu0 0.0
    %1616 = vmatprep.subr.mxu0 0.0
    %1617 = vmatpush1.msra.mxu0 0.0
    %1618 = vmatprep.subr.mxu0 0.0
    %1619 = vmatpush1.msra.mxu0 0.0
    %1620 = vmatprep.subr.mxu0 0.0
    %1621 = vmatpush1.msra.mxu0 0.0
    %1622 = vmatprep.subr.mxu0 0.0
    %1623 = vmatpush1.msra.mxu0 0.0
    %1624 = vmatprep.subr.mxu0 0.0
    %1625 = vmatpush1.msra.mxu0 0.0
    %1626 = vmatprep.subr.mxu0 0.0
    %1627 = vmatpush1.msra.mxu0 0.0
    %1628 = vmatprep.subr.mxu0 0.0
    %1629 = vmatpush1.msra.mxu0 %v1198
    %1630 = vmatprep.subr.mxu0 0.0
    %1631 = vmatpush1.msra.mxu0 %v1197
    %1632 = vmatprep.subr.mxu0 0.0
    %1633 = vmatpush1.msra.mxu0 %v1196
    %1634 = vmatprep.subr.mxu0 0.0
    %1635 = vmatpush1.msra.mxu0 %v1195
    %1636 = vmatprep.subr.mxu0 0.0
    %1637 = vmatpush2.msra.mxu0 0.0
    %1638 = vmatprep.subr.mxu0 0.0
    %1639 = vmatpush2.msra.mxu0 0.0
    %1640 = vmatprep.subr.mxu0 0.0
    %1641 = vmatpush2.msra.mxu0 0.0
    %1642 = vmatprep.subr.mxu0 0.0
    %1643 = vmatpush2.msra.mxu0 0.0
    %1644 = vmatprep.subr.mxu0 0.0
    %1645 = vmatpush2.msra.mxu0 0.0
    %1646 = vmatprep.subr.mxu0 0.0
    %1647 = vmatpush2.msra.mxu0 0.0
    %1648 = vmatprep.subr.mxu0 0.0
    %1649 = vmatpush2.msra.mxu0 0.0
    %1650 = vmatprep.subr.mxu0 0.0
    %1651 = vmatpush2.msra.mxu0 0.0
    %1652 = vmatprep.subr.mxu0 0.0
    %1653 = vmatpush2.msra.mxu0 0.0
    %1654 = vmatprep.subr.mxu0 0.0
    %1655 = vmatpush2.msra.mxu0 0.0
    %1656 = vmatprep.subr.mxu0 0.0
    %1657 = vmatpush2.msra.mxu0 0.0
    %1658 = vmatprep.subr.mxu0 0.0
    %1659 = vmatpush2.msra.mxu0 0.0
    %1660 = vmatprep.subr.mxu0 0.0
    %1661 = vmatpush2.msra.mxu0 0.0
    %1662 = vmatprep.subr.mxu0 0.0
    %1663 = vmatpush2.msra.mxu0 0.0
    %1664 = vmatprep.subr.mxu0 0.0
    %1665 = vmatpush2.msra.mxu0 0.0
    %1666 = vmatprep.subr.mxu0 0.0
    %1667 = vmatpush2.msra.mxu0 0.0
    %1668 = vmatprep.mubr.f32.mxu0 0.0
    %1669 = vmatmul.mubr.f32.gmra.mxu0 %v1602
    %v1670 = vpop.f32.mrf.mxu0
    %v1671 = vadd.f32 0.0, %v1670
    %v1672 = vpop.f32.mrf.mxu0
    %1673 = vdwg.mxu0
    %v1674 = vadd.f32 %v1598, %v1671
    %v1675 = vxor.u32 %v1674, 2147483648
    %v1676 = vmul.f32 %v1675, 1.442695
    %v1677 = vpow.pop %v1676
    %v1678 = vadd.f32 %v1677, 1.0
    %v1679 = vrcp.pop %v1678
    %v1680 = vmul.f32 1.0, %v1679
    %v1681 = vtanh.pop %v1674
    %v1682 = vmul.f32 %v1680, %v1591
    %1684 = vrot.lane.b32.xlu0 %v1681, 64
    %v1685 = vpop.permute.xlu0 %1684
    %v1687 = vmul.f32 %v1680, %v1685
    %1689 = vrot.lane.b32.xlu0 %v1687, 32
    %v1690 = vpop.permute.xlu0 %1689
    %v1692 = vadd.f32 %v1682, %v1690
    %v1693 = vtanh.pop %v1692
    %1695 = vrot.lane.b32.xlu0 %v1693, 64
    %v1696 = vpop.permute.xlu0 %1695
    %v1698 = vmul.f32 %v1680, %v1696
    %v1699 = vld [vmem:[%s724] sm:$0xff]
    %1701 = vrot.lane.b32.xlu0 %v1698, 32
    %v1702 = vpop.permute.xlu0 %1701
    %v1703 = vsel %vm58, %v1702, 0
    %1705 = vmatprep.subr.mxu0 0.0
    %1706 = vmatpush1.msra.mxu0 0.0
    %1707 = vmatprep.subr.mxu0 0.0
    %1708 = vmatpush1.msra.mxu0 0.0
    %1709 = vmatprep.subr.mxu0 0.0
    %1710 = vmatpush1.msra.mxu0 0.0
    %1711 = vmatprep.subr.mxu0 0.0
    %1712 = vmatpush1.msra.mxu0 0.0
    %1713 = vmatprep.subr.mxu0 0.0
    %1714 = vmatpush1.msra.mxu0 0.0
    %1715 = vmatprep.subr.mxu0 0.0
    %1716 = vmatpush1.msra.mxu0 0.0
    %1717 = vmatprep.subr.mxu0 0.0
    %1718 = vmatpush1.msra.mxu0 0.0
    %1719 = vmatprep.subr.mxu0 0.0
    %1720 = vmatpush1.msra.mxu0 0.0
    %1721 = vmatprep.subr.mxu0 0.0
    %1722 = vmatpush1.msra.mxu0 0.0
    %1723 = vmatprep.subr.mxu0 0.0
    %1724 = vmatpush1.msra.mxu0 0.0
    %1725 = vmatprep.subr.mxu0 0.0
    %1726 = vmatpush1.msra.mxu0 0.0
    %1727 = vmatprep.subr.mxu0 0.0
    %1728 = vmatpush1.msra.mxu0 0.0
    %1729 = vmatprep.subr.mxu0 0.0
    %1730 = vmatpush1.msra.mxu0 %v1198
    %1731 = vmatprep.subr.mxu0 0.0
    %1732 = vmatpush1.msra.mxu0 %v1197
    %1733 = vmatprep.subr.mxu0 0.0
    %1734 = vmatpush1.msra.mxu0 %v1196
    %1735 = vmatprep.subr.mxu0 0.0
    %1736 = vmatpush1.msra.mxu0 %v1195
    %1737 = vmatprep.subr.mxu0 0.0
    %1738 = vmatpush2.msra.mxu0 0.0
    %1739 = vmatprep.subr.mxu0 0.0
    %1740 = vmatpush2.msra.mxu0 0.0
    %1741 = vmatprep.subr.mxu0 0.0
    %1742 = vmatpush2.msra.mxu0 0.0
    %1743 = vmatprep.subr.mxu0 0.0
    %1744 = vmatpush2.msra.mxu0 0.0
    %1745 = vmatprep.subr.mxu0 0.0
    %1746 = vmatpush2.msra.mxu0 0.0
    %1747 = vmatprep.subr.mxu0 0.0
    %1748 = vmatpush2.msra.mxu0 0.0
    %1749 = vmatprep.subr.mxu0 0.0
    %1750 = vmatpush2.msra.mxu0 0.0
    %1751 = vmatprep.subr.mxu0 0.0
    %1752 = vmatpush2.msra.mxu0 0.0
    %1753 = vmatprep.subr.mxu0 0.0
    %1754 = vmatpush2.msra.mxu0 0.0
    %1755 = vmatprep.subr.mxu0 0.0
    %1756 = vmatpush2.msra.mxu0 0.0
    %1757 = vmatprep.subr.mxu0 0.0
    %1758 = vmatpush2.msra.mxu0 0.0
    %1759 = vmatprep.subr.mxu0 0.0
    %1760 = vmatpush2.msra.mxu0 0.0
    %1761 = vmatprep.subr.mxu0 0.0
    %1762 = vmatpush2.msra.mxu0 0.0
    %1763 = vmatprep.subr.mxu0 0.0
    %1764 = vmatpush2.msra.mxu0 0.0
    %1765 = vmatprep.subr.mxu0 0.0
    %1766 = vmatpush2.msra.mxu0 0.0
    %1767 = vmatprep.subr.mxu0 0.0
    %1768 = vmatpush2.msra.mxu0 0.0
    %1769 = vmatprep.mubr.f32.mxu0 0.0
    %1770 = vmatmul.mubr.f32.gmra.mxu0 %v1703
    %v1771 = vpop.f32.mrf.mxu0
    %v1772 = vadd.f32 0.0, %v1771
    %v1773 = vpop.f32.mrf.mxu0
    %1774 = vdwg.mxu0
    %v1775 = vadd.f32 %v1699, %v1772
    %v1776 = vxor.u32 %v1775, 2147483648
    %v1777 = vmul.f32 %v1776, 1.442695
    %v1778 = vpow.pop %v1777
    %v1779 = vadd.f32 %v1778, 1.0
    %v1780 = vrcp.pop %v1779
    %v1781 = vmul.f32 1.0, %v1780
    %v1782 = vtanh.pop %v1775
    %v1783 = vmul.f32 %v1781, %v1692
    %1785 = vrot.lane.b32.xlu0 %v1782, 64
    %v1786 = vpop.permute.xlu0 %1785
    %v1788 = vmul.f32 %v1781, %v1786
    %1790 = vrot.lane.b32.xlu0 %v1788, 32
    %v1791 = vpop.permute.xlu0 %1790
    %v1793 = vadd.f32 %v1783, %v1791
    %v1794 = vtanh.pop %v1793
    %1796 = vrot.lane.b32.xlu0 %v1794, 64
    %v1797 = vpop.permute.xlu0 %1796
    %v1799 = vmul.f32 %v1781, %v1797
    %v1800 = vld [vmem:[%s829] sm:$0xff]
    %1802 = vrot.lane.b32.xlu0 %v1799, 32
    %v1803 = vpop.permute.xlu0 %1802
    %v1804 = vsel %vm58, %v1803, 0
    %1806 = vmatprep.subr.mxu0 0.0
    %1807 = vmatpush1.msra.mxu0 0.0
    %1808 = vmatprep.subr.mxu0 0.0
    %1809 = vmatpush1.msra.mxu0 0.0
    %1810 = vmatprep.subr.mxu0 0.0
    %1811 = vmatpush1.msra.mxu0 0.0
    %1812 = vmatprep.subr.mxu0 0.0
    %1813 = vmatpush1.msra.mxu0 0.0
    %1814 = vmatprep.subr.mxu0 0.0
    %1815 = vmatpush1.msra.mxu0 0.0
    %1816 = vmatprep.subr.mxu0 0.0
    %1817 = vmatpush1.msra.mxu0 0.0
    %1818 = vmatprep.subr.mxu0 0.0
    %1819 = vmatpush1.msra.mxu0 0.0
    %1820 = vmatprep.subr.mxu0 0.0
    %1821 = vmatpush1.msra.mxu0 0.0
    %1822 = vmatprep.subr.mxu0 0.0
    %1823 = vmatpush1.msra.mxu0 0.0
    %1824 = vmatprep.subr.mxu0 0.0
    %1825 = vmatpush1.msra.mxu0 0.0
    %1826 = vmatprep.subr.mxu0 0.0
    %1827 = vmatpush1.msra.mxu0 0.0
    %1828 = vmatprep.subr.mxu0 0.0
    %1829 = vmatpush1.msra.mxu0 0.0
    %1830 = vmatprep.subr.mxu0 0.0
    %1831 = vmatpush1.msra.mxu0 %v1198
    %1832 = vmatprep.subr.mxu0 0.0
    %1833 = vmatpush1.msra.mxu0 %v1197
    %1834 = vmatprep.subr.mxu0 0.0
    %1835 = vmatpush1.msra.mxu0 %v1196
    %1836 = vmatprep.subr.mxu0 0.0
    %1837 = vmatpush1.msra.mxu0 %v1195
    %1838 = vmatprep.subr.mxu0 0.0
    %1839 = vmatpush2.msra.mxu0 0.0
    %1840 = vmatprep.subr.mxu0 0.0
    %1841 = vmatpush2.msra.mxu0 0.0
    %1842 = vmatprep.subr.mxu0 0.0
    %1843 = vmatpush2.msra.mxu0 0.0
    %1844 = vmatprep.subr.mxu0 0.0
    %1845 = vmatpush2.msra.mxu0 0.0
    %1846 = vmatprep.subr.mxu0 0.0
    %1847 = vmatpush2.msra.mxu0 0.0
    %1848 = vmatprep.subr.mxu0 0.0
    %1849 = vmatpush2.msra.mxu0 0.0
    %1850 = vmatprep.subr.mxu0 0.0
    %1851 = vmatpush2.msra.mxu0 0.0
    %1852 = vmatprep.subr.mxu0 0.0
    %1853 = vmatpush2.msra.mxu0 0.0
    %1854 = vmatprep.subr.mxu0 0.0
    %1855 = vmatpush2.msra.mxu0 0.0
    %1856 = vmatprep.subr.mxu0 0.0
    %1857 = vmatpush2.msra.mxu0 0.0
    %1858 = vmatprep.subr.mxu0 0.0
    %1859 = vmatpush2.msra.mxu0 0.0
    %1860 = vmatprep.subr.mxu0 0.0
    %1861 = vmatpush2.msra.mxu0 0.0
    %1862 = vmatprep.subr.mxu0 0.0
    %1863 = vmatpush2.msra.mxu0 0.0
    %1864 = vmatprep.subr.mxu0 0.0
    %1865 = vmatpush2.msra.mxu0 0.0
    %1866 = vmatprep.subr.mxu0 0.0
    %1867 = vmatpush2.msra.mxu0 0.0
    %1868 = vmatprep.subr.mxu0 0.0
    %1869 = vmatpush2.msra.mxu0 0.0
    %1870 = vmatprep.mubr.f32.mxu0 0.0
    %1871 = vmatmul.mubr.f32.gmra.mxu0 %v1804
    %v1872 = vpop.f32.mrf.mxu0
    %v1873 = vadd.f32 0.0, %v1872
    %v1874 = vpop.f32.mrf.mxu0
    %1875 = vdwg.mxu0
    %v1876 = vadd.f32 %v1800, %v1873
    %v1877 = vxor.u32 %v1876, 2147483648
    %v1878 = vmul.f32 %v1877, 1.442695
    %v1879 = vpow.pop %v1878
    %v1880 = vadd.f32 %v1879, 1.0
    %v1881 = vrcp.pop %v1880
    %v1882 = vmul.f32 1.0, %v1881
    %v1883 = vtanh.pop %v1876
    %v1884 = vmul.f32 %v1882, %v1793
    %1886 = vrot.lane.b32.xlu0 %v1883, 64
    %v1887 = vpop.permute.xlu0 %1886
    %v1889 = vmul.f32 %v1882, %v1887
    %1891 = vrot.lane.b32.xlu0 %v1889, 32
    %v1892 = vpop.permute.xlu0 %1891
    %v1894 = vadd.f32 %v1884, %v1892
    %v1895 = vtanh.pop %v1894
    %1897 = vrot.lane.b32.xlu0 %v1895, 64
    %v1898 = vpop.permute.xlu0 %1897
    %v1900 = vmul.f32 %v1882, %v1898
    %v1901 = vld [vmem:[%s934] sm:$0xff]
    %1903 = vrot.lane.b32.xlu0 %v1900, 32
    %v1904 = vpop.permute.xlu0 %1903
    %v1905 = vsel %vm58, %v1904, 0
    %1907 = vmatprep.subr.mxu0 0.0
    %1908 = vmatpush1.msra.mxu0 0.0
    %1909 = vmatprep.subr.mxu0 0.0
    %1910 = vmatpush1.msra.mxu0 0.0
    %1911 = vmatprep.subr.mxu0 0.0
    %1912 = vmatpush1.msra.mxu0 0.0
    %1913 = vmatprep.subr.mxu0 0.0
    %1914 = vmatpush1.msra.mxu0 0.0
    %1915 = vmatprep.subr.mxu0 0.0
    %1916 = vmatpush1.msra.mxu0 0.0
    %1917 = vmatprep.subr.mxu0 0.0
    %1918 = vmatpush1.msra.mxu0 0.0
    %1919 = vmatprep.subr.mxu0 0.0
    %1920 = vmatpush1.msra.mxu0 0.0
    %1921 = vmatprep.subr.mxu0 0.0
    %1922 = vmatpush1.msra.mxu0 0.0
    %1923 = vmatprep.subr.mxu0 0.0
    %1924 = vmatpush1.msra.mxu0 0.0
    %1925 = vmatprep.subr.mxu0 0.0
    %1926 = vmatpush1.msra.mxu0 0.0
    %1927 = vmatprep.subr.mxu0 0.0
    %1928 = vmatpush1.msra.mxu0 0.0
    %1929 = vmatprep.subr.mxu0 0.0
    %1930 = vmatpush1.msra.mxu0 0.0
    %1931 = vmatprep.subr.mxu0 0.0
    %1932 = vmatpush1.msra.mxu0 %v1198
    %1933 = vmatprep.subr.mxu0 0.0
    %1934 = vmatpush1.msra.mxu0 %v1197
    %1935 = vmatprep.subr.mxu0 0.0
    %1936 = vmatpush1.msra.mxu0 %v1196
    %1937 = vmatprep.subr.mxu0 0.0
    %1938 = vmatpush1.msra.mxu0 %v1195
    %1939 = vmatprep.subr.mxu0 0.0
    %1940 = vmatpush2.msra.mxu0 0.0
    %1941 = vmatprep.subr.mxu0 0.0
    %1942 = vmatpush2.msra.mxu0 0.0
    %1943 = vmatprep.subr.mxu0 0.0
    %1944 = vmatpush2.msra.mxu0 0.0
    %1945 = vmatprep.subr.mxu0 0.0
    %1946 = vmatpush2.msra.mxu0 0.0
    %1947 = vmatprep.subr.mxu0 0.0
    %1948 = vmatpush2.msra.mxu0 0.0
    %1949 = vmatprep.subr.mxu0 0.0
    %1950 = vmatpush2.msra.mxu0 0.0
    %1951 = vmatprep.subr.mxu0 0.0
    %1952 = vmatpush2.msra.mxu0 0.0
    %1953 = vmatprep.subr.mxu0 0.0
    %1954 = vmatpush2.msra.mxu0 0.0
    %1955 = vmatprep.subr.mxu0 0.0
    %1956 = vmatpush2.msra.mxu0 0.0
    %1957 = vmatprep.subr.mxu0 0.0
    %1958 = vmatpush2.msra.mxu0 0.0
    %1959 = vmatprep.subr.mxu0 0.0
    %1960 = vmatpush2.msra.mxu0 0.0
    %1961 = vmatprep.subr.mxu0 0.0
    %1962 = vmatpush2.msra.mxu0 0.0
    %1963 = vmatprep.subr.mxu0 0.0
    %1964 = vmatpush2.msra.mxu0 0.0
    %1965 = vmatprep.subr.mxu0 0.0
    %1966 = vmatpush2.msra.mxu0 0.0
    %1967 = vmatprep.subr.mxu0 0.0
    %1968 = vmatpush2.msra.mxu0 0.0
    %1969 = vmatprep.subr.mxu0 0.0
    %1970 = vmatpush2.msra.mxu0 0.0
    %1971 = vmatprep.mubr.f32.mxu0 0.0
    %1972 = vmatmul.mubr.f32.gmra.mxu0 %v1905
    %v1973 = vpop.f32.mrf.mxu0
    %v1974 = vadd.f32 0.0, %v1973
    %v1975 = vpop.f32.mrf.mxu0
    %1976 = vdwg.mxu0
    %v1977 = vadd.f32 %v1901, %v1974
    %v1978 = vxor.u32 %v1977, 2147483648
    %v1979 = vmul.f32 %v1978, 1.442695
    %v1980 = vpow.pop %v1979
    %v1981 = vadd.f32 %v1980, 1.0
    %v1982 = vrcp.pop %v1981
    %v1983 = vmul.f32 1.0, %v1982
    %v1984 = vtanh.pop %v1977
    %v1985 = vmul.f32 %v1983, %v1894
    %1987 = vrot.lane.b32.xlu0 %v1984, 64
    %v1988 = vpop.permute.xlu0 %1987
    %v1990 = vmul.f32 %v1983, %v1988
    %1992 = vrot.lane.b32.xlu0 %v1990, 32
    %v1993 = vpop.permute.xlu0 %1992
    %v1995 = vadd.f32 %v1985, %v1993
    %v1996 = vtanh.pop %v1995
    %1998 = vrot.lane.b32.xlu0 %v1996, 64
    %v1999 = vpop.permute.xlu0 %1998
    %v2001 = vmul.f32 %v1983, %v1999
    %v2002 = vld [vmem:[%s7] sm:$0xff]
    %v2003 = vld [vmem:[%s7 + $0x8] sm:$0xff]
    %v2004 = vld [vmem:[%s7 + $0x10] sm:$0xff]
    %v2005 = vld [vmem:[%s7 + $0x18] sm:$0xff]
    %v2006 = vld [vmem:[%s8] sm:$0x1]
    %v2008 = vlaneseq
    %v2009 = vshrl.u32 %v2008, 7
    %v2010 = vsub.s32 0, %v2009
    %v2011 = vrot.slane %v2006, %v2010
    %2014 = vrot.lane.b32.xlu0 %v2001, 32
    %v2015 = vpop.permute.xlu0 %2014
    %v2016 = vsel %vm58, %v2015, 0
    %2018 = vmatprep.subr.mxu0 0.0
    %2019 = vmatpush1.msra.mxu0 0.0
    %2020 = vmatprep.subr.mxu0 0.0
    %2021 = vmatpush1.msra.mxu0 0.0
    %2022 = vmatprep.subr.mxu0 0.0
    %2023 = vmatpush1.msra.mxu0 0.0
    %2024 = vmatprep.subr.mxu0 0.0
    %2025 = vmatpush1.msra.mxu0 0.0
    %2026 = vmatprep.subr.mxu0 0.0
    %2027 = vmatpush1.msra.mxu0 0.0
    %2028 = vmatprep.subr.mxu0 0.0
    %2029 = vmatpush1.msra.mxu0 0.0
    %2030 = vmatprep.subr.mxu0 0.0
    %2031 = vmatpush1.msra.mxu0 0.0
    %2032 = vmatprep.subr.mxu0 0.0
    %2033 = vmatpush1.msra.mxu0 0.0
    %2034 = vmatprep.subr.mxu0 0.0
    %2035 = vmatpush1.msra.mxu0 0.0
    %2036 = vmatprep.subr.mxu0 0.0
    %2037 = vmatpush1.msra.mxu0 0.0
    %2038 = vmatprep.subr.mxu0 0.0
    %2039 = vmatpush1.msra.mxu0 0.0
    %2040 = vmatprep.subr.mxu0 0.0
    %2041 = vmatpush1.msra.mxu0 0.0
    %2042 = vmatprep.subr.mxu0 0.0
    %2043 = vmatpush1.msra.mxu0 %v2005
    %2044 = vmatprep.subr.mxu0 0.0
    %2045 = vmatpush1.msra.mxu0 %v2004
    %2046 = vmatprep.subr.mxu0 0.0
    %2047 = vmatpush1.msra.mxu0 %v2003
    %2048 = vmatprep.subr.mxu0 0.0
    %2049 = vmatpush1.msra.mxu0 %v2002
    %2050 = vmatprep.subr.mxu0 0.0
    %2051 = vmatpush2.msra.mxu0 0.0
    %2052 = vmatprep.subr.mxu0 0.0
    %2053 = vmatpush2.msra.mxu0 0.0
    %2054 = vmatprep.subr.mxu0 0.0
    %2055 = vmatpush2.msra.mxu0 0.0
    %2056 = vmatprep.subr.mxu0 0.0
    %2057 = vmatpush2.msra.mxu0 0.0
    %2058 = vmatprep.subr.mxu0 0.0
    %2059 = vmatpush2.msra.mxu0 0.0
    %2060 = vmatprep.subr.mxu0 0.0
    %2061 = vmatpush2.msra.mxu0 0.0
    %2062 = vmatprep.subr.mxu0 0.0
    %2063 = vmatpush2.msra.mxu0 0.0
    %2064 = vmatprep.subr.mxu0 0.0
    %2065 = vmatpush2.msra.mxu0 0.0
    %2066 = vmatprep.subr.mxu0 0.0
    %2067 = vmatpush2.msra.mxu0 0.0
    %2068 = vmatprep.subr.mxu0 0.0
    %2069 = vmatpush2.msra.mxu0 0.0
    %2070 = vmatprep.subr.mxu0 0.0
    %2071 = vmatpush2.msra.mxu0 0.0
    %2072 = vmatprep.subr.mxu0 0.0
    %2073 = vmatpush2.msra.mxu0 0.0
    %2074 = vmatprep.subr.mxu0 0.0
    %2075 = vmatpush2.msra.mxu0 0.0
    %2076 = vmatprep.subr.mxu0 0.0
    %2077 = vmatpush2.msra.mxu0 0.0
    %2078 = vmatprep.subr.mxu0 0.0
    %2079 = vmatpush2.msra.mxu0 0.0
    %2080 = vmatprep.subr.mxu0 0.0
    %2081 = vmatpush2.msra.mxu0 0.0
    %2082 = vmatprep.mubr.f32.mxu0 0.0
    %2083 = vmatmul.mubr.f32.gmra.mxu0 %v2016
    %v2084 = vpop.f32.mrf.mxu0
    %v2085 = vadd.f32 %v2011, %v2084
    %v2086 = vpop.f32.mrf.mxu0
    %2087 = vdwg.mxu0
    %v2088 = vxor.u32 %v2085, 2147483648
    %v2089 = vmul.f32 %v2088, 1.442695
    %v2090 = vpow.pop %v2089
    %v2091 = vadd.f32 %v2090, 1.0
    %v2092 = vrcp.pop %v2091
    %v2093 = vmul.f32 1.0, %v2092
    %v2094 = vld [vmem:[%s9] sm:$0xff]
    %v2095 = vld [vmem:[%s9 + $0x8] sm:$0xff]
    %v2096 = vld [vmem:[%s9 + $0x10] sm:$0xff]
    %v2097 = vld [vmem:[%s9 + $0x18] sm:$0xff]
    %v2098 = vld [vmem:[%s9 + $0x20] sm:$0xff]
    %v2099 = vld [vmem:[%s9 + $0x28] sm:$0xff]
    %v2100 = vld [vmem:[%s9 + $0x30] sm:$0xff]
    %v2101 = vld [vmem:[%s9 + $0x38] sm:$0xff]
    %v2102 = vld [vmem:[%s10] sm:$0x1]
    %v2104 = vlaneseq
    %v2105 = vshrl.u32 %v2104, 7
    %v2106 = vsub.s32 0, %v2105
    %v2107 = vrot.slane %v2102, %v2106
    %vm2109 = vcmask 523264
    %v2111 = vsel %vm2109, %v2093, 0
    %2113 = vmatprep.subr.mxu0 0.0
    %2114 = vmatpush1.msra.mxu0 0.0
    %2115 = vmatprep.subr.mxu0 0.0
    %2116 = vmatpush1.msra.mxu0 0.0
    %2117 = vmatprep.subr.mxu0 0.0
    %2118 = vmatpush1.msra.mxu0 0.0
    %2119 = vmatprep.subr.mxu0 0.0
    %2120 = vmatpush1.msra.mxu0 0.0
    %2121 = vmatprep.subr.mxu0 0.0
    %2122 = vmatpush1.msra.mxu0 0.0
    %2123 = vmatprep.subr.mxu0 0.0
    %2124 = vmatpush1.msra.mxu0 0.0
    %2125 = vmatprep.subr.mxu0 0.0
    %2126 = vmatpush1.msra.mxu0 0.0
    %2127 = vmatprep.subr.mxu0 0.0
    %2128 = vmatpush1.msra.mxu0 0.0
    %2129 = vmatprep.subr.mxu0 0.0
    %2130 = vmatpush1.msra.mxu0 %v2101
    %2131 = vmatprep.subr.mxu0 0.0
    %2132 = vmatpush1.msra.mxu0 %v2100
    %2133 = vmatprep.subr.mxu0 0.0
    %2134 = vmatpush1.msra.mxu0 %v2099
    %2135 = vmatprep.subr.mxu0 0.0
    %2136 = vmatpush1.msra.mxu0 %v2098
    %2137 = vmatprep.subr.mxu0 0.0
    %2138 = vmatpush1.msra.mxu0 %v2097
    %2139 = vmatprep.subr.mxu0 0.0
    %2140 = vmatpush1.msra.mxu0 %v2096
    %2141 = vmatprep.subr.mxu0 0.0
    %2142 = vmatpush1.msra.mxu0 %v2095
    %2143 = vmatprep.subr.mxu0 0.0
    %2144 = vmatpush1.msra.mxu0 %v2094
    %2145 = vmatprep.subr.mxu0 0.0
    %2146 = vmatpush2.msra.mxu0 0.0
    %2147 = vmatprep.subr.mxu0 0.0
    %2148 = vmatpush2.msra.mxu0 0.0
    %2149 = vmatprep.subr.mxu0 0.0
    %2150 = vmatpush2.msra.mxu0 0.0
    %2151 = vmatprep.subr.mxu0 0.0
    %2152 = vmatpush2.msra.mxu0 0.0
    %2153 = vmatprep.subr.mxu0 0.0
    %2154 = vmatpush2.msra.mxu0 0.0
    %2155 = vmatprep.subr.mxu0 0.0
    %2156 = vmatpush2.msra.mxu0 0.0
    %2157 = vmatprep.subr.mxu0 0.0
    %2158 = vmatpush2.msra.mxu0 0.0
    %2159 = vmatprep.subr.mxu0 0.0
    %2160 = vmatpush2.msra.mxu0 0.0
    %2161 = vmatprep.subr.mxu0 0.0
    %2162 = vmatpush2.msra.mxu0 0.0
    %2163 = vmatprep.subr.mxu0 0.0
    %2164 = vmatpush2.msra.mxu0 0.0
    %2165 = vmatprep.subr.mxu0 0.0
    %2166 = vmatpush2.msra.mxu0 0.0
    %2167 = vmatprep.subr.mxu0 0.0
    %2168 = vmatpush2.msra.mxu0 0.0
    %2169 = vmatprep.subr.mxu0 0.0
    %2170 = vmatpush2.msra.mxu0 0.0
    %2171 = vmatprep.subr.mxu0 0.0
    %2172 = vmatpush2.msra.mxu0 0.0
    %2173 = vmatprep.subr.mxu0 0.0
    %2174 = vmatpush2.msra.mxu0 0.0
    %2175 = vmatprep.subr.mxu0 0.0
    %2176 = vmatpush2.msra.mxu0 0.0
    %2177 = vmatprep.mubr.f32.mxu0 0.0
    %2178 = vmatmul.mubr.f32.gmra.mxu0 %v2111
    %v2179 = vpop.f32.mrf.mxu0
    %v2180 = vadd.f32 %v2107, %v2179
    %v2181 = vpop.f32.mrf.mxu0
    %2182 = vdwg.mxu0
    %vm2183 = vcmask 64512
    %v2184 = vsel %vm2183, %v2180, -inf
    %2185 = vmax.xlane.f32.xlu0 %v2184
    %v2186 = vpop.xlane.xlu0 %2185
    %v2187 = vsub.f32 %v2180, %v2186
    %v2188 = vmul.f32 %v2187, 1.442695
    %v2189 = vpow.pop %v2188
    %v2190 = vsel %vm2183, %v2189, 0.0
    %2191 = vadd.xlane.f32.xlu0 %v2190
    %v2192 = vpop.xlane.xlu0 %2191
    %v2193 = vrcp.pop %v2192
    %v2194 = vmul.f32 %v2189, %v2193
    %2195 = vst.msk [vmem:[#allocation4] sm:$0xff] %vm2183, %v2194
    // Predicated region
    $region46: #{irpnet_forward.1} parent=1 // pred_check
      _
    $region47: #{irpnet_forward.1} parent=1 // pred_check_branch
      %2197 = sbr.rel (0) target = $region49
    $region48: #{irpnet_forward.1} parent=1 // pred_region
      %s2199 = ssub.s32 128, 128
      %2200 = vsyncadd [#allocation5], %s2199
      %s2202 = sshll.u32 [#allocation4], 4
      %s2203 = int_to_ptr.vmem [resolvable:$true] %s2202
      %2205 = dma.vmem_to_hbm [thread:$0]  %s2203, 128, %s11, [#allocation5]
    $region49: #{irpnet_forward.1} parent=1 // pred_fallthru
      _
    // Predicated region
    $region50: #{irpnet_forward.1} parent=1 // pred_check
      _
    $region51: #{irpnet_forward.1} parent=1 // pred_check_branch
      %2207 = sbr.rel (0) target = $region53
    $region52: #{irpnet_forward.1} parent=1 // pred_region
      %2208 = dma.done [#allocation5], 128
    $region53: #{irpnet_forward.1} parent=1 // pred_fallthru
      _
    %2209 = vsyncpa [#allocation5], 1

</llo_original>
